<compile_context>
chip_gen: v5e
topology: v5e:2x2
jax: 0.10.0
libtpu: 0.0.40
codegen_flags: <defaults>
</compile_context>

<pallas_src>
import jax
import jax.numpy as jnp
from jax import lax
from jax.experimental import pallas as pl
from jax.experimental.pallas import tpu as pltpu


def _round_up(x, m):
    return ((x + m - 1) // m) * m


def _make_kernel(T_actual, Hg):
    """Builds the kernel closure over the true (unpadded) sequence length."""

    def lstm_fc_kernel(x_ref, w_ih_ref, w_hh_ref, b_ref, fc_w_ref, fc_b_ref,
                       out_ref, gx_ref, h_ref, c_ref):
        # x_ref:    (Tt, Bb, Ep)   bf16  time-major embedded inputs for this chunk
        # w_ih_ref: (Ep, 4*Hg)     bf16  input->gates (PyTorch order i,f,g,o)
        # w_hh_ref: (Hg, 4*Hg)     bf16  hidden->gates
        # b_ref:    (1, 4*Hg)      f32   b_ih + b_hh
        # fc_w_ref: (Hg, Cp)       bf16
        # fc_b_ref: (1, Cp)        f32
        # out_ref:  (Bb, Cp)       f32   written only on the last time chunk
        # gx_ref:   (Tt, Bb, 4*Hg) f32   scratch: hoisted input projection
        # h_ref, c_ref: (Bb, Hg)   f32   scratch: recurrent state across chunks
        Tt, Bb, Ep = x_ref.shape
        G = 4 * Hg
        tchunk = pl.program_id(1)

        @pl.when(tchunk == 0)
        def _():
            h_ref[...] = jnp.zeros_like(h_ref)
            c_ref[...] = jnp.zeros_like(c_ref)

        # Hoisted non-recurrent projection: one MXU matmul for the whole chunk,
        # bias folded in once.
        x_flat = x_ref[...].reshape(Tt * Bb, Ep)
        gx = jnp.dot(x_flat, w_ih_ref[...], preferred_element_type=jnp.float32)
        gx_ref[...] = gx.reshape(Tt, Bb, G) + b_ref[...]

        w_hh = w_hh_ref[...]
        t0 = tchunk * Tt

        def step(t, carry):
            h, c = carry
            gates = gx_ref[t] + jnp.dot(h.astype(w_hh.dtype), w_hh,
                                        preferred_element_type=jnp.float32)
            # PyTorch gate order (i, f, g, o); per-gate padded lanes stay 0 in
            # h/c exactly (zero weight/bias columns => sigmoid(0)*0 terms).
            i_g = jax.nn.sigmoid(gates[:, 0 * Hg:1 * Hg])
            f_g = jax.nn.sigmoid(gates[:, 1 * Hg:2 * Hg])
            g_g = jnp.tanh(gates[:, 2 * Hg:3 * Hg])
            o_g = jax.nn.sigmoid(gates[:, 3 * Hg:4 * Hg])
            c_new = f_g * c + i_g * g_g
            h_new = o_g * jnp.tanh(c_new)
            # Masked tail: steps past the real T hold the state unchanged.
            valid = (t0 + t) < T_actual
            return (jnp.where(valid, h_new, h), jnp.where(valid, c_new, c))

        h, c = lax.fori_loop(0, Tt, step, (h_ref[...], c_ref[...]),
                             unroll=min(int(Tt), 8))
        h_ref[...] = h
        c_ref[...] = c

        @pl.when(tchunk == pl.num_programs(1) - 1)
        def _():
            out_ref[...] = (jnp.dot(h.astype(fc_w_ref.dtype), fc_w_ref[...],
                                    preferred_element_type=jnp.float32)
                            + fc_b_ref[...])

    return lstm_fc_kernel


def word_level_char_predictor(x_tokens, params, *, time_chunk=None):
    """x_tokens: int32 (B, T) word ids.  Returns (B, char_vocab) f32 logits."""
    emb = params["embedding"]          # (V_word, E)
    w_ih = params["w_ih"]              # (E, 4H), PyTorch gate order (i,f,g,o)
    w_hh = params["w_hh"]              # (H, 4H)
    b = params["b"]                    # (1, 4H)  (= b_ih + b_hh)
    fc_w = params["fc_w"]              # (H, C)
    fc_b = params["fc_b"]              # (1, C)

    B, T = x_tokens.shape
    E = emb.shape[1]
    H = w_hh.shape[0]
    C = fc_w.shape[1]

    # Gate stride: smallest per-gate padding keeping the packed 4-gate block a
    # multiple of 128 lanes (H=32 -> Hg=32, 4*Hg=128; H multiple of 128 -> Hg=H).
    Hg = _round_up(H, 32)
    G = 4 * Hg
    Ep = _round_up(E, 128)
    Cp = _round_up(C, 128)

    # Batch: 16-sublane padding (bf16 packs 2 rows/sublane); large batches split
    # into blocks for the leading "parallel" grid axis (v7x dual TensorCore).
    Bb = 16 if B <= 16 else 64
    Bp = _round_up(B, Bb)
    n_bblocks = Bp // Bb

    def pad_gates(w, rows, rows_p):
        out = jnp.zeros((rows_p, G), jnp.float32)
        for k in range(4):
            out = out.at[:rows, k * Hg:k * Hg + H].set(w[:, k * H:(k + 1) * H])
        return out

    w_ih_p = pad_gates(w_ih, E, Ep).astype(jnp.bfloat16)
    w_hh_p = pad_gates(w_hh, H, Hg).astype(jnp.bfloat16)
    b_p = jnp.zeros((1, G), jnp.float32)
    for k in range(4):
        b_p = b_p.at[:, k * Hg:k * Hg + H].set(b[:, k * H:(k + 1) * H])
    fc_w_p = (jnp.zeros((Hg, Cp), jnp.float32)
              .at[:H, :C].set(fc_w).astype(jnp.bfloat16))
    fc_b_p = jnp.zeros((1, Cp), jnp.float32).at[:, :C].set(fc_b)

    # Generation-aware VMEM budget (v5e/v6e 128 MiB, v7x 64 MiB per TC).
    try:
        vmem_cap = int(getattr(pltpu.get_tpu_info(), "vmem_capacity_bytes",
                               64 * 1024 * 1024))
    except Exception:  # fall back to a budget valid on every generation
        vmem_cap = 64 * 1024 * 1024
    vmem_limit = min(int(vmem_cap * 0.8), 110 * 1024 * 1024)

    # Time chunk sized from the VMEM budget: double-buffered bf16 x block plus
    # the f32 gx scratch dominate; weights/out/state are the fixed cost.
    if time_chunk is None:
        fixed = 2 * (Ep * G * 2 + Hg * G * 2 + G * 4 + Hg * Cp * 2 + Cp * 4)
        fixed += 2 * Bb * Cp * 4 + 2 * Bb * Hg * 4
        per_step = 2 * Bb * Ep * 2 + Bb * G * 4
        budget = int(vmem_limit * 0.6)
        time_chunk = max(1, min(T, (budget - fixed) // per_step, 128))
    Tt = int(time_chunk)
    Tpad = _round_up(T, Tt)
    n_chunks = Tpad // Tt

    # Embedding gather + (B,T,E)->(T,B,E) transpose stay as cheap JAX glue.
    x_emb = jnp.take(emb, x_tokens, axis=0)            # (B, T, E)
    x_emb = jnp.transpose(x_emb, (1, 0, 2))            # (T, B, E)
    x_p = jnp.zeros((Tpad, Bp, Ep), jnp.bfloat16)
    x_p = x_p.at[:T, :B, :E].set(x_emb.astype(jnp.bfloat16))

    kernel = _make_kernel(T, Hg)

    grid_spec = pltpu.PrefetchScalarGridSpec(
        num_scalar_prefetch=0,
        grid=(n_bblocks, n_chunks),             # batch blocks outer, time inner
        in_specs=[
            pl.BlockSpec((Tt, Bb, Ep), lambda bb, t: (t, bb, 0)),
            pl.BlockSpec((Ep, G), lambda bb, t: (0, 0)),
            pl.BlockSpec((Hg, G), lambda bb, t: (0, 0)),
            pl.BlockSpec((1, G), lambda bb, t: (0, 0)),
            pl.BlockSpec((Hg, Cp), lambda bb, t: (0, 0)),
            pl.BlockSpec((1, Cp), lambda bb, t: (0, 0)),
        ],
        out_specs=pl.BlockSpec((Bb, Cp), lambda bb, t: (bb, 0)),
        scratch_shapes=[
            pltpu.VMEM((Tt, Bb, G), jnp.float32),   # hoisted gates_x
            pltpu.VMEM((Bb, Hg), jnp.float32),      # h carry
            pltpu.VMEM((Bb, Hg), jnp.float32),      # c carry
        ],
    )

    out_p = pl.pallas_call(
        kernel,
        out_shape=jax.ShapeDtypeStruct((Bp, Cp), jnp.float32),
        grid_spec=grid_spec,
        compiler_params=pltpu.CompilerParams(
            dimension_semantics=("parallel", "arbitrary"),
            vmem_limit_bytes=vmem_limit,
        ),
    )(x_p, w_ih_p, w_hh_p, b_p, fc_w_p, fc_b_p)

    return out_p[:B, :C]


def reference_forward(x_tokens, params):
    """Pure-JAX f32 reference replicating nn.Embedding + nn.LSTM + nn.Linear."""
    emb = params["embedding"]
    w_ih, w_hh, b = params["w_ih"], params["w_hh"], params["b"]
    fc_w, fc_b = params["fc_w"], params["fc_b"]
    H = w_hh.shape[0]

    x_emb = jnp.take(emb, x_tokens, axis=0).astype(jnp.float32)  # (B, T, E)
    B, T, _ = x_emb.shape
    h = jnp.zeros((B, H), jnp.float32)
    c = jnp.zeros((B, H), jnp.float32)
    for t in range(T):
        gates = x_emb[:, t, :] @ w_ih + h @ w_hh + b
        i_g = jax.nn.sigmoid(gates[:, 0 * H:1 * H])
        f_g = jax.nn.sigmoid(gates[:, 1 * H:2 * H])
        g_g = jnp.tanh(gates[:, 2 * H:3 * H])
        o_g = jax.nn.sigmoid(gates[:, 3 * H:4 * H])
        c = f_g * c + i_g * g_g
        h = o_g * jnp.tanh(c)
    return h @ fc_w + fc_b


def init_params(key, word_vocab, char_vocab, embedding_dim, hidden_dim):
    """Deterministic init mimicking PyTorch default scales (PyTorch gate order)."""
    ks = jax.random.split(key, 7)
    k_lstm = 1.0 / jnp.sqrt(hidden_dim)
    k_fc = 1.0 / jnp.sqrt(hidden_dim)
    u = lambda k, shape, s: jax.random.uniform(k, shape, jnp.float32, -s, s)
    params = {
        "embedding": jax.random.normal(ks[0], (word_vocab, embedding_dim),
                                       jnp.float32),
        # stored pre-transposed relative to PyTorch (4H,E)/(4H,H)
        "w_ih": u(ks[1], (embedding_dim, 4 * hidden_dim), k_lstm),
        "w_hh": u(ks[2], (hidden_dim, 4 * hidden_dim), k_lstm),
        "b": (u(ks[3], (1, 4 * hidden_dim), k_lstm)
              + u(ks[4], (1, 4 * hidden_dim), k_lstm)),   # b_ih + b_hh
        "fc_w": u(ks[5], (hidden_dim, char_vocab), k_fc),
        "fc_b": u(ks[6], (1, char_vocab), k_fc),
    }
    return params


if __name__ == "__main__":
    # small shapes consistent with the module's forward
    word_vocab_size = 50
    char_vocab_size = 16
    embedding_dim = 32
    hidden_dim = 32
    sequence_length = 8
    batch = 2

    key = jax.random.PRNGKey(0)
    k_param, k_tok = jax.random.split(key)
    params = init_params(k_param, word_vocab_size, char_vocab_size,
                         embedding_dim, hidden_dim)
    x_tokens = jax.random.randint(k_tok, (batch, sequence_length), 0,
                                  word_vocab_size, dtype=jnp.int32)

    ref = reference_forward(x_tokens, params)

    # auto chunking (single chunk), exact multi-chunk carry, and masked tail.
    out_auto = jax.block_until_ready(
        word_level_char_predictor(x_tokens, params))
    out_c4 = jax.block_until_ready(
        word_level_char_predictor(x_tokens, params, time_chunk=4))
    out_c3 = jax.block_until_ready(
        word_level_char_predictor(x_tokens, params, time_chunk=3))

    for out in (out_auto, out_c4, out_c3):
        assert out.shape == (batch, char_vocab_size)
        # bf16 MXU inputs with f32 accumulation -> looser tolerance than pure f32.
        assert jnp.allclose(out, ref, atol=5e-2, rtol=5e-2), "mismatch vs reference"

    print("KERNEL_OK")
</pallas_src>

<mosaic_0001>
module attributes {stable_mosaic.version = 11 : i64} {
  func.func @lstm_fc_kernel(%arg0: i32, %arg1: i32, %arg2: memref<8x16x128xbf16, #tpu.memory_space<vmem>>, %arg3: memref<128x128xbf16, #tpu.memory_space<vmem>>, %arg4: memref<32x128xbf16, #tpu.memory_space<vmem>>, %arg5: memref<1x128xf32, #tpu.memory_space<vmem>>, %arg6: memref<32x128xbf16, #tpu.memory_space<vmem>>, %arg7: memref<1x128xf32, #tpu.memory_space<vmem>>, %arg8: memref<16x128xf32, #tpu.memory_space<vmem>>, %arg9: memref<8x16x128xf32, #tpu.memory_space<vmem>>, %arg10: memref<16x32xf32, #tpu.memory_space<vmem>>, %arg11: memref<16x32xf32, #tpu.memory_space<vmem>>) attributes {dimension_semantics = [#tpu.dimension_semantics<parallel>, #tpu.dimension_semantics<arbitrary>], iteration_bounds = array<i64: 1, 1>, scalar_prefetch = 0 : i64, scratch_operands = 3 : i64, tpu.core_type = #tpu.core_type<tc>, window_params = [{transform_indices = @transform_0, window_bounds = array<i64: 8, 16, 128>}, {pipeline_mode = #tpu.pipeline_mode<synchronous>, transform_indices = @transform_1, window_bounds = array<i64: 128, 128>}, {pipeline_mode = #tpu.pipeline_mode<synchronous>, transform_indices = @transform_2, window_bounds = array<i64: 32, 128>}, {pipeline_mode = #tpu.pipeline_mode<synchronous>, transform_indices = @transform_3, window_bounds = array<i64: 1, 128>}, {pipeline_mode = #tpu.pipeline_mode<synchronous>, transform_indices = @transform_4, window_bounds = array<i64: 32, 128>}, {pipeline_mode = #tpu.pipeline_mode<synchronous>, transform_indices = @transform_5, window_bounds = array<i64: 1, 128>}, {transform_indices = @transform_6, window_bounds = array<i64: 16, 128>}]} {
    %c0_i32 = arith.constant 0 : i32
    %0 = arith.cmpi eq, %arg1, %c0_i32 : i32
    %1 = arith.extui %0 : i1 to i32
    %c0_i32_0 = arith.constant 0 : i32
    %2 = arith.cmpi ne, %1, %c0_i32_0 : i32
    scf.if %2 {
      %cst_80 = arith.constant 0.000000e+00 : f32
      %302 = vector.broadcast %cst_80 : f32 to vector<16x32xf32>
      %c0_81 = arith.constant 0 : index
      %c0_82 = arith.constant 0 : index
      %303 = vector.load %arg10[%c0_81, %c0_82] : memref<16x32xf32, #tpu.memory_space<vmem>>, vector<16x32xf32>
      tpu.vector_store %arg10[%c0_81, %c0_82], %302 {strides = array<i32>} : memref<16x32xf32, #tpu.memory_space<vmem>>, vector<16x32xf32>,
      %cst_83 = arith.constant 0.000000e+00 : f32
      %304 = vector.broadcast %cst_83 : f32 to vector<16x32xf32>
      %c0_84 = arith.constant 0 : index
      %c0_85 = arith.constant 0 : index
      %305 = vector.load %arg11[%c0_84, %c0_85] : memref<16x32xf32, #tpu.memory_space<vmem>>, vector<16x32xf32>
      tpu.vector_store %arg11[%c0_84, %c0_85], %304 {strides = array<i32>} : memref<16x32xf32, #tpu.memory_space<vmem>>, vector<16x32xf32>,
    } else {
    }
    %c0 = arith.constant 0 : index
    %c0_1 = arith.constant 0 : index
    %c0_2 = arith.constant 0 : index
    %3 = vector.load %arg2[%c0, %c0_1, %c0_2] : memref<8x16x128xbf16, #tpu.memory_space<vmem>>, vector<8x16x128xbf16>
    %4 = vector.shape_cast %3 : vector<8x16x128xbf16> to vector<128x128xbf16>
    %c0_3 = arith.constant 0 : index
    %c0_4 = arith.constant 0 : index
    %5 = vector.load %arg3[%c0_3, %c0_4] : memref<128x128xbf16, #tpu.memory_space<vmem>>, vector<128x128xbf16>
    %cst = arith.constant dense<0.000000e+00> : vector<128x128xf32>
    %6 = tpu.matmul %4, %5, %cst {dimension_numbers = #tpu.dot_dimension_numbers<[1], [0], [0], [1], [0, 0, 1, 1], [], []>} : vector<128x128xbf16>, vector<128x128xbf16>, vector<128x128xf32> -> vector<128x128xf32>
    %7 = vector.shape_cast %6 : vector<128x128xf32> to vector<8x16x128xf32>
    %c0_5 = arith.constant 0 : index
    %c0_6 = arith.constant 0 : index
    %8 = vector.load %arg5[%c0_5, %c0_6] : memref<1x128xf32, #tpu.memory_space<vmem>>, vector<1x128xf32>
    %9 = vector.shape_cast %8 : vector<1x128xf32> to vector<1x1x128xf32>
    %10 = vector.broadcast %9 : vector<1x1x128xf32> to vector<8x16x128xf32>
    %11 = arith.addf %7, %10 : vector<8x16x128xf32>
    %c0_7 = arith.constant 0 : index
    %c0_8 = arith.constant 0 : index
    %c0_9 = arith.constant 0 : index
    %12 = vector.load %arg9[%c0_7, %c0_8, %c0_9] : memref<8x16x128xf32, #tpu.memory_space<vmem>>, vector<8x16x128xf32>
    tpu.vector_store %arg9[%c0_7, %c0_8, %c0_9], %11 {strides = array<i32>} : memref<8x16x128xf32, #tpu.memory_space<vmem>>, vector<8x16x128xf32>,
    %c0_10 = arith.constant 0 : index
    %c0_11 = arith.constant 0 : index
    %13 = vector.load %arg4[%c0_10, %c0_11] : memref<32x128xbf16, #tpu.memory_space<vmem>>, vector<32x128xbf16>
    %c8_i32 = arith.constant 8 : i32
    %14 = arith.muli %arg1, %c8_i32 : i32
    %c0_12 = arith.constant 0 : index
    %c0_13 = arith.constant 0 : index
    %15 = vector.load %arg10[%c0_12, %c0_13] : memref<16x32xf32, #tpu.memory_space<vmem>>, vector<16x32xf32>
    %c0_14 = arith.constant 0 : index
    %c0_15 = arith.constant 0 : index
    %16 = vector.load %arg11[%c0_14, %c0_15] : memref<16x32xf32, #tpu.memory_space<vmem>>, vector<16x32xf32>
    %c0_i32_16 = arith.constant 0 : i32
    %17 = arith.index_cast %c0_i32_16 : i32 to index
    %c0_17 = arith.constant 0 : index
    %c0_18 = arith.constant 0 : index
    %18 = vector.load %arg9[%17, %c0_17, %c0_18] : memref<8x16x128xf32, #tpu.memory_space<vmem>>, vector<1x16x128xf32>
    %19 = vector.shape_cast %18 : vector<1x16x128xf32> to vector<16x128xf32>
    %20 = arith.truncf %15 : vector<16x32xf32> to vector<16x32xbf16>
    %cst_19 = arith.constant dense<0.000000e+00> : vector<16x128xf32>
    %21 = tpu.matmul %20, %13, %cst_19 {dimension_numbers = #tpu.dot_dimension_numbers<[1], [0], [0], [1], [0, 0, 1, 1], [], []>} : vector<16x32xbf16>, vector<32x128xbf16>, vector<16x128xf32> -> vector<16x128xf32>
    %22 = arith.addf %19, %21 : vector<16x128xf32>
    %23 = vector.extract_strided_slice %22 {offsets = [0, 0], sizes = [16, 32], strides = [1, 1]} : vector<16x128xf32> to vector<16x32xf32>
    %24 = arith.negf %23 : vector<16x32xf32>
    %25 = math.exp %24 : vector<16x32xf32>
    %cst_20 = arith.constant 1.000000e+00 : f32
    %26 = vector.broadcast %cst_20 : f32 to vector<16x32xf32>
    %27 = arith.addf %26, %25 : vector<16x32xf32>
    %28 = arith.divf %26, %27 : vector<16x32xf32>
    %29 = vector.extract_strided_slice %22 {offsets = [0, 32], sizes = [16, 32], strides = [1, 1]} : vector<16x128xf32> to vector<16x32xf32>
    %30 = arith.negf %29 : vector<16x32xf32>
    %31 = math.exp %30 : vector<16x32xf32>
    %cst_21 = arith.constant 1.000000e+00 : f32
    %32 = vector.broadcast %cst_21 : f32 to vector<16x32xf32>
    %33 = arith.addf %32, %31 : vector<16x32xf32>
    %34 = arith.divf %32, %33 : vector<16x32xf32>
    %35 = vector.extract_strided_slice %22 {offsets = [0, 64], sizes = [16, 32], strides = [1, 1]} : vector<16x128xf32> to vector<16x32xf32>
    %36 = math.tanh %35 : vector<16x32xf32>
    %37 = vector.extract_strided_slice %22 {offsets = [0, 96], sizes = [16, 32], strides = [1, 1]} : vector<16x128xf32> to vector<16x32xf32>
    %38 = arith.negf %37 : vector<16x32xf32>
    %39 = math.exp %38 : vector<16x32xf32>
    %cst_22 = arith.constant 1.000000e+00 : f32
    %40 = vector.broadcast %cst_22 : f32 to vector<16x32xf32>
    %41 = arith.addf %40, %39 : vector<16x32xf32>
    %42 = arith.divf %40, %41 : vector<16x32xf32>
    %43 = arith.mulf %34, %16 : vector<16x32xf32>
    %44 = arith.mulf %28, %36 : vector<16x32xf32>
    %45 = arith.addf %43, %44 : vector<16x32xf32>
    %46 = math.tanh %45 : vector<16x32xf32>
    %47 = arith.mulf %42, %46 : vector<16x32xf32>
    %48 = arith.addi %14, %c0_i32_16 : i32
    %c8_i32_23 = arith.constant 8 : i32
    %49 = arith.cmpi slt, %48, %c8_i32_23 : i32
    %50 = arith.select %49, %47, %15 : vector<16x32xf32>
    %51 = arith.select %49, %45, %16 : vector<16x32xf32>
    %c1_i32 = arith.constant 1 : i32
    %52 = arith.index_cast %c1_i32 : i32 to index
    %c0_24 = arith.constant 0 : index
    %c0_25 = arith.constant 0 : index
    %53 = vector.load %arg9[%52, %c0_24, %c0_25] : memref<8x16x128xf32, #tpu.memory_space<vmem>>, vector<1x16x128xf32>
    %54 = vector.shape_cast %53 : vector<1x16x128xf32> to vector<16x128xf32>
    %55 = arith.truncf %50 : vector<16x32xf32> to vector<16x32xbf16>
    %cst_26 = arith.constant dense<0.000000e+00> : vector<16x128xf32>
    %56 = tpu.matmul %55, %13, %cst_26 {dimension_numbers = #tpu.dot_dimension_numbers<[1], [0], [0], [1], [0, 0, 1, 1], [], []>} : vector<16x32xbf16>, vector<32x128xbf16>, vector<16x128xf32> -> vector<16x128xf32>
    %57 = arith.addf %54, %56 : vector<16x128xf32>
    %58 = vector.extract_strided_slice %57 {offsets = [0, 0], sizes = [16, 32], strides = [1, 1]} : vector<16x128xf32> to vector<16x32xf32>
    %59 = arith.negf %58 : vector<16x32xf32>
    %60 = math.exp %59 : vector<16x32xf32>
    %cst_27 = arith.constant 1.000000e+00 : f32
    %61 = vector.broadcast %cst_27 : f32 to vector<16x32xf32>
    %62 = arith.addf %61, %60 : vector<16x32xf32>
    %63 = arith.divf %61, %62 : vector<16x32xf32>
    %64 = vector.extract_strided_slice %57 {offsets = [0, 32], sizes = [16, 32], strides = [1, 1]} : vector<16x128xf32> to vector<16x32xf32>
    %65 = arith.negf %64 : vector<16x32xf32>
    %66 = math.exp %65 : vector<16x32xf32>
    %cst_28 = arith.constant 1.000000e+00 : f32
    %67 = vector.broadcast %cst_28 : f32 to vector<16x32xf32>
    %68 = arith.addf %67, %66 : vector<16x32xf32>
    %69 = arith.divf %67, %68 : vector<16x32xf32>
    %70 = vector.extract_strided_slice %57 {offsets = [0, 64], sizes = [16, 32], strides = [1, 1]} : vector<16x128xf32> to vector<16x32xf32>
    %71 = math.tanh %70 : vector<16x32xf32>
    %72 = vector.extract_strided_slice %57 {offsets = [0, 96], sizes = [16, 32], strides = [1, 1]} : vector<16x128xf32> to vector<16x32xf32>
    %73 = arith.negf %72 : vector<16x32xf32>
    %74 = math.exp %73 : vector<16x32xf32>
    %cst_29 = arith.constant 1.000000e+00 : f32
    %75 = vector.broadcast %cst_29 : f32 to vector<16x32xf32>
    %76 = arith.addf %75, %74 : vector<16x32xf32>
    %77 = arith.divf %75, %76 : vector<16x32xf32>
    %78 = arith.mulf %69, %51 : vector<16x32xf32>
    %79 = arith.mulf %63, %71 : vector<16x32xf32>
    %80 = arith.addf %78, %79 : vector<16x32xf32>
    %81 = math.tanh %80 : vector<16x32xf32>
    %82 = arith.mulf %77, %81 : vector<16x32xf32>
    %83 = arith.addi %14, %c1_i32 : i32
    %c8_i32_30 = arith.constant 8 : i32
    %84 = arith.cmpi slt, %83, %c8_i32_30 : i32
    %85 = arith.select %84, %82, %50 : vector<16x32xf32>
    %86 = arith.select %84, %80, %51 : vector<16x32xf32>
    %c2_i32 = arith.constant 2 : i32
    %87 = arith.index_cast %c2_i32 : i32 to index
    %c0_31 = arith.constant 0 : index
    %c0_32 = arith.constant 0 : index
    %88 = vector.load %arg9[%87, %c0_31, %c0_32] : memref<8x16x128xf32, #tpu.memory_space<vmem>>, vector<1x16x128xf32>
    %89 = vector.shape_cast %88 : vector<1x16x128xf32> to vector<16x128xf32>
    %90 = arith.truncf %85 : vector<16x32xf32> to vector<16x32xbf16>
    %cst_33 = arith.constant dense<0.000000e+00> : vector<16x128xf32>
    %91 = tpu.matmul %90, %13, %cst_33 {dimension_numbers = #tpu.dot_dimension_numbers<[1], [0], [0], [1], [0, 0, 1, 1], [], []>} : vector<16x32xbf16>, vector<32x128xbf16>, vector<16x128xf32> -> vector<16x128xf32>
    %92 = arith.addf %89, %91 : vector<16x128xf32>
    %93 = vector.extract_strided_slice %92 {offsets = [0, 0], sizes = [16, 32], strides = [1, 1]} : vector<16x128xf32> to vector<16x32xf32>
    %94 = arith.negf %93 : vector<16x32xf32>
    %95 = math.exp %94 : vector<16x32xf32>
    %cst_34 = arith.constant 1.000000e+00 : f32
    %96 = vector.broadcast %cst_34 : f32 to vector<16x32xf32>
    %97 = arith.addf %96, %95 : vector<16x32xf32>
    %98 = arith.divf %96, %97 : vector<16x32xf32>
    %99 = vector.extract_strided_slice %92 {offsets = [0, 32], sizes = [16, 32], strides = [1, 1]} : vector<16x128xf32> to vector<16x32xf32>
    %100 = arith.negf %99 : vector<16x32xf32>
    %101 = math.exp %100 : vector<16x32xf32>
    %cst_35 = arith.constant 1.000000e+00 : f32
    %102 = vector.broadcast %cst_35 : f32 to vector<16x32xf32>
    %103 = arith.addf %102, %101 : vector<16x32xf32>
    %104 = arith.divf %102, %103 : vector<16x32xf32>
    %105 = vector.extract_strided_slice %92 {offsets = [0, 64], sizes = [16, 32], strides = [1, 1]} : vector<16x128xf32> to vector<16x32xf32>
    %106 = math.tanh %105 : vector<16x32xf32>
    %107 = vector.extract_strided_slice %92 {offsets = [0, 96], sizes = [16, 32], strides = [1, 1]} : vector<16x128xf32> to vector<16x32xf32>
    %108 = arith.negf %107 : vector<16x32xf32>
    %109 = math.exp %108 : vector<16x32xf32>
    %cst_36 = arith.constant 1.000000e+00 : f32
    %110 = vector.broadcast %cst_36 : f32 to vector<16x32xf32>
    %111 = arith.addf %110, %109 : vector<16x32xf32>
    %112 = arith.divf %110, %111 : vector<16x32xf32>
    %113 = arith.mulf %104, %86 : vector<16x32xf32>
    %114 = arith.mulf %98, %106 : vector<16x32xf32>
    %115 = arith.addf %113, %114 : vector<16x32xf32>
    %116 = math.tanh %115 : vector<16x32xf32>
    %117 = arith.mulf %112, %116 : vector<16x32xf32>
    %118 = arith.addi %14, %c2_i32 : i32
    %c8_i32_37 = arith.constant 8 : i32
    %119 = arith.cmpi slt, %118, %c8_i32_37 : i32
    %120 = arith.select %119, %117, %85 : vector<16x32xf32>
    %121 = arith.select %119, %115, %86 : vector<16x32xf32>
    %c3_i32 = arith.constant 3 : i32
    %122 = arith.index_cast %c3_i32 : i32 to index
    %c0_38 = arith.constant 0 : index
    %c0_39 = arith.constant 0 : index
    %123 = vector.load %arg9[%122, %c0_38, %c0_39] : memref<8x16x128xf32, #tpu.memory_space<vmem>>, vector<1x16x128xf32>
    %124 = vector.shape_cast %123 : vector<1x16x128xf32> to vector<16x128xf32>
    %125 = arith.truncf %120 : vector<16x32xf32> to vector<16x32xbf16>
    %cst_40 = arith.constant dense<0.000000e+00> : vector<16x128xf32>
    %126 = tpu.matmul %125, %13, %cst_40 {dimension_numbers = #tpu.dot_dimension_numbers<[1], [0], [0], [1], [0, 0, 1, 1], [], []>} : vector<16x32xbf16>, vector<32x128xbf16>, vector<16x128xf32> -> vector<16x128xf32>
    %127 = arith.addf %124, %126 : vector<16x128xf32>
    %128 = vector.extract_strided_slice %127 {offsets = [0, 0], sizes = [16, 32], strides = [1, 1]} : vector<16x128xf32> to vector<16x32xf32>
    %129 = arith.negf %128 : vector<16x32xf32>
    %130 = math.exp %129 : vector<16x32xf32>
    %cst_41 = arith.constant 1.000000e+00 : f32
    %131 = vector.broadcast %cst_41 : f32 to vector<16x32xf32>
    %132 = arith.addf %131, %130 : vector<16x32xf32>
    %133 = arith.divf %131, %132 : vector<16x32xf32>
    %134 = vector.extract_strided_slice %127 {offsets = [0, 32], sizes = [16, 32], strides = [1, 1]} : vector<16x128xf32> to vector<16x32xf32>
    %135 = arith.negf %134 : vector<16x32xf32>
    %136 = math.exp %135 : vector<16x32xf32>
    %cst_42 = arith.constant 1.000000e+00 : f32
    %137 = vector.broadcast %cst_42 : f32 to vector<16x32xf32>
    %138 = arith.addf %137, %136 : vector<16x32xf32>
    %139 = arith.divf %137, %138 : vector<16x32xf32>
    %140 = vector.extract_strided_slice %127 {offsets = [0, 64], sizes = [16, 32], strides = [1, 1]} : vector<16x128xf32> to vector<16x32xf32>
    %141 = math.tanh %140 : vector<16x32xf32>
    %142 = vector.extract_strided_slice %127 {offsets = [0, 96], sizes = [16, 32], strides = [1, 1]} : vector<16x128xf32> to vector<16x32xf32>
    %143 = arith.negf %142 : vector<16x32xf32>
    %144 = math.exp %143 : vector<16x32xf32>
    %cst_43 = arith.constant 1.000000e+00 : f32
    %145 = vector.broadcast %cst_43 : f32 to vector<16x32xf32>
    %146 = arith.addf %145, %144 : vector<16x32xf32>
    %147 = arith.divf %145, %146 : vector<16x32xf32>
    %148 = arith.mulf %139, %121 : vector<16x32xf32>
    %149 = arith.mulf %133, %141 : vector<16x32xf32>
    %150 = arith.addf %148, %149 : vector<16x32xf32>
    %151 = math.tanh %150 : vector<16x32xf32>
    %152 = arith.mulf %147, %151 : vector<16x32xf32>
    %153 = arith.addi %14, %c3_i32 : i32
    %c8_i32_44 = arith.constant 8 : i32
    %154 = arith.cmpi slt, %153, %c8_i32_44 : i32
    %155 = arith.select %154, %152, %120 : vector<16x32xf32>
    %156 = arith.select %154, %150, %121 : vector<16x32xf32>
    %c4_i32 = arith.constant 4 : i32
    %157 = arith.index_cast %c4_i32 : i32 to index
    %c0_45 = arith.constant 0 : index
    %c0_46 = arith.constant 0 : index
    %158 = vector.load %arg9[%157, %c0_45, %c0_46] : memref<8x16x128xf32, #tpu.memory_space<vmem>>, vector<1x16x128xf32>
    %159 = vector.shape_cast %158 : vector<1x16x128xf32> to vector<16x128xf32>
    %160 = arith.truncf %155 : vector<16x32xf32> to vector<16x32xbf16>
    %cst_47 = arith.constant dense<0.000000e+00> : vector<16x128xf32>
    %161 = tpu.matmul %160, %13, %cst_47 {dimension_numbers = #tpu.dot_dimension_numbers<[1], [0], [0], [1], [0, 0, 1, 1], [], []>} : vector<16x32xbf16>, vector<32x128xbf16>, vector<16x128xf32> -> vector<16x128xf32>
    %162 = arith.addf %159, %161 : vector<16x128xf32>
    %163 = vector.extract_strided_slice %162 {offsets = [0, 0], sizes = [16, 32], strides = [1, 1]} : vector<16x128xf32> to vector<16x32xf32>
    %164 = arith.negf %163 : vector<16x32xf32>
    %165 = math.exp %164 : vector<16x32xf32>
    %cst_48 = arith.constant 1.000000e+00 : f32
    %166 = vector.broadcast %cst_48 : f32 to vector<16x32xf32>
    %167 = arith.addf %166, %165 : vector<16x32xf32>
    %168 = arith.divf %166, %167 : vector<16x32xf32>
    %169 = vector.extract_strided_slice %162 {offsets = [0, 32], sizes = [16, 32], strides = [1, 1]} : vector<16x128xf32> to vector<16x32xf32>
    %170 = arith.negf %169 : vector<16x32xf32>
    %171 = math.exp %170 : vector<16x32xf32>
    %cst_49 = arith.constant 1.000000e+00 : f32
    %172 = vector.broadcast %cst_49 : f32 to vector<16x32xf32>
    %173 = arith.addf %172, %171 : vector<16x32xf32>
    %174 = arith.divf %172, %173 : vector<16x32xf32>
    %175 = vector.extract_strided_slice %162 {offsets = [0, 64], sizes = [16, 32], strides = [1, 1]} : vector<16x128xf32> to vector<16x32xf32>
    %176 = math.tanh %175 : vector<16x32xf32>
    %177 = vector.extract_strided_slice %162 {offsets = [0, 96], sizes = [16, 32], strides = [1, 1]} : vector<16x128xf32> to vector<16x32xf32>
    %178 = arith.negf %177 : vector<16x32xf32>
    %179 = math.exp %178 : vector<16x32xf32>
    %cst_50 = arith.constant 1.000000e+00 : f32
    %180 = vector.broadcast %cst_50 : f32 to vector<16x32xf32>
    %181 = arith.addf %180, %179 : vector<16x32xf32>
    %182 = arith.divf %180, %181 : vector<16x32xf32>
    %183 = arith.mulf %174, %156 : vector<16x32xf32>
    %184 = arith.mulf %168, %176 : vector<16x32xf32>
    %185 = arith.addf %183, %184 : vector<16x32xf32>
    %186 = math.tanh %185 : vector<16x32xf32>
    %187 = arith.mulf %182, %186 : vector<16x32xf32>
    %188 = arith.addi %14, %c4_i32 : i32
    %c8_i32_51 = arith.constant 8 : i32
    %189 = arith.cmpi slt, %188, %c8_i32_51 : i32
    %190 = arith.select %189, %187, %155 : vector<16x32xf32>
    %191 = arith.select %189, %185, %156 : vector<16x32xf32>
    %c5_i32 = arith.constant 5 : i32
    %192 = arith.index_cast %c5_i32 : i32 to index
    %c0_52 = arith.constant 0 : index
    %c0_53 = arith.constant 0 : index
    %193 = vector.load %arg9[%192, %c0_52, %c0_53] : memref<8x16x128xf32, #tpu.memory_space<vmem>>, vector<1x16x128xf32>
    %194 = vector.shape_cast %193 : vector<1x16x128xf32> to vector<16x128xf32>
    %195 = arith.truncf %190 : vector<16x32xf32> to vector<16x32xbf16>
    %cst_54 = arith.constant dense<0.000000e+00> : vector<16x128xf32>
    %196 = tpu.matmul %195, %13, %cst_54 {dimension_numbers = #tpu.dot_dimension_numbers<[1], [0], [0], [1], [0, 0, 1, 1], [], []>} : vector<16x32xbf16>, vector<32x128xbf16>, vector<16x128xf32> -> vector<16x128xf32>
    %197 = arith.addf %194, %196 : vector<16x128xf32>
    %198 = vector.extract_strided_slice %197 {offsets = [0, 0], sizes = [16, 32], strides = [1, 1]} : vector<16x128xf32> to vector<16x32xf32>
    %199 = arith.negf %198 : vector<16x32xf32>
    %200 = math.exp %199 : vector<16x32xf32>
    %cst_55 = arith.constant 1.000000e+00 : f32
    %201 = vector.broadcast %cst_55 : f32 to vector<16x32xf32>
    %202 = arith.addf %201, %200 : vector<16x32xf32>
    %203 = arith.divf %201, %202 : vector<16x32xf32>
    %204 = vector.extract_strided_slice %197 {offsets = [0, 32], sizes = [16, 32], strides = [1, 1]} : vector<16x128xf32> to vector<16x32xf32>
    %205 = arith.negf %204 : vector<16x32xf32>
    %206 = math.exp %205 : vector<16x32xf32>
    %cst_56 = arith.constant 1.000000e+00 : f32
    %207 = vector.broadcast %cst_56 : f32 to vector<16x32xf32>
    %208 = arith.addf %207, %206 : vector<16x32xf32>
    %209 = arith.divf %207, %208 : vector<16x32xf32>
    %210 = vector.extract_strided_slice %197 {offsets = [0, 64], sizes = [16, 32], strides = [1, 1]} : vector<16x128xf32> to vector<16x32xf32>
    %211 = math.tanh %210 : vector<16x32xf32>
    %212 = vector.extract_strided_slice %197 {offsets = [0, 96], sizes = [16, 32], strides = [1, 1]} : vector<16x128xf32> to vector<16x32xf32>
    %213 = arith.negf %212 : vector<16x32xf32>
    %214 = math.exp %213 : vector<16x32xf32>
    %cst_57 = arith.constant 1.000000e+00 : f32
    %215 = vector.broadcast %cst_57 : f32 to vector<16x32xf32>
    %216 = arith.addf %215, %214 : vector<16x32xf32>
    %217 = arith.divf %215, %216 : vector<16x32xf32>
    %218 = arith.mulf %209, %191 : vector<16x32xf32>
    %219 = arith.mulf %203, %211 : vector<16x32xf32>
    %220 = arith.addf %218, %219 : vector<16x32xf32>
    %221 = math.tanh %220 : vector<16x32xf32>
    %222 = arith.mulf %217, %221 : vector<16x32xf32>
    %223 = arith.addi %14, %c5_i32 : i32
    %c8_i32_58 = arith.constant 8 : i32
    %224 = arith.cmpi slt, %223, %c8_i32_58 : i32
    %225 = arith.select %224, %222, %190 : vector<16x32xf32>
    %226 = arith.select %224, %220, %191 : vector<16x32xf32>
    %c6_i32 = arith.constant 6 : i32
    %227 = arith.index_cast %c6_i32 : i32 to index
    %c0_59 = arith.constant 0 : index
    %c0_60 = arith.constant 0 : index
    %228 = vector.load %arg9[%227, %c0_59, %c0_60] : memref<8x16x128xf32, #tpu.memory_space<vmem>>, vector<1x16x128xf32>
    %229 = vector.shape_cast %228 : vector<1x16x128xf32> to vector<16x128xf32>
    %230 = arith.truncf %225 : vector<16x32xf32> to vector<16x32xbf16>
    %cst_61 = arith.constant dense<0.000000e+00> : vector<16x128xf32>
    %231 = tpu.matmul %230, %13, %cst_61 {dimension_numbers = #tpu.dot_dimension_numbers<[1], [0], [0], [1], [0, 0, 1, 1], [], []>} : vector<16x32xbf16>, vector<32x128xbf16>, vector<16x128xf32> -> vector<16x128xf32>
    %232 = arith.addf %229, %231 : vector<16x128xf32>
    %233 = vector.extract_strided_slice %232 {offsets = [0, 0], sizes = [16, 32], strides = [1, 1]} : vector<16x128xf32> to vector<16x32xf32>
    %234 = arith.negf %233 : vector<16x32xf32>
    %235 = math.exp %234 : vector<16x32xf32>
    %cst_62 = arith.constant 1.000000e+00 : f32
    %236 = vector.broadcast %cst_62 : f32 to vector<16x32xf32>
    %237 = arith.addf %236, %235 : vector<16x32xf32>
    %238 = arith.divf %236, %237 : vector<16x32xf32>
    %239 = vector.extract_strided_slice %232 {offsets = [0, 32], sizes = [16, 32], strides = [1, 1]} : vector<16x128xf32> to vector<16x32xf32>
    %240 = arith.negf %239 : vector<16x32xf32>
    %241 = math.exp %240 : vector<16x32xf32>
    %cst_63 = arith.constant 1.000000e+00 : f32
    %242 = vector.broadcast %cst_63 : f32 to vector<16x32xf32>
    %243 = arith.addf %242, %241 : vector<16x32xf32>
    %244 = arith.divf %242, %243 : vector<16x32xf32>
    %245 = vector.extract_strided_slice %232 {offsets = [0, 64], sizes = [16, 32], strides = [1, 1]} : vector<16x128xf32> to vector<16x32xf32>
    %246 = math.tanh %245 : vector<16x32xf32>
    %247 = vector.extract_strided_slice %232 {offsets = [0, 96], sizes = [16, 32], strides = [1, 1]} : vector<16x128xf32> to vector<16x32xf32>
    %248 = arith.negf %247 : vector<16x32xf32>
    %249 = math.exp %248 : vector<16x32xf32>
    %cst_64 = arith.constant 1.000000e+00 : f32
    %250 = vector.broadcast %cst_64 : f32 to vector<16x32xf32>
    %251 = arith.addf %250, %249 : vector<16x32xf32>
    %252 = arith.divf %250, %251 : vector<16x32xf32>
    %253 = arith.mulf %244, %226 : vector<16x32xf32>
    %254 = arith.mulf %238, %246 : vector<16x32xf32>
    %255 = arith.addf %253, %254 : vector<16x32xf32>
    %256 = math.tanh %255 : vector<16x32xf32>
    %257 = arith.mulf %252, %256 : vector<16x32xf32>
    %258 = arith.addi %14, %c6_i32 : i32
    %c8_i32_65 = arith.constant 8 : i32
    %259 = arith.cmpi slt, %258, %c8_i32_65 : i32
    %260 = arith.select %259, %257, %225 : vector<16x32xf32>
    %261 = arith.select %259, %255, %226 : vector<16x32xf32>
    %c7_i32 = arith.constant 7 : i32
    %262 = arith.index_cast %c7_i32 : i32 to index
    %c0_66 = arith.constant 0 : index
    %c0_67 = arith.constant 0 : index
    %263 = vector.load %arg9[%262, %c0_66, %c0_67] : memref<8x16x128xf32, #tpu.memory_space<vmem>>, vector<1x16x128xf32>
    %264 = vector.shape_cast %263 : vector<1x16x128xf32> to vector<16x128xf32>
    %265 = arith.truncf %260 : vector<16x32xf32> to vector<16x32xbf16>
    %cst_68 = arith.constant dense<0.000000e+00> : vector<16x128xf32>
    %266 = tpu.matmul %265, %13, %cst_68 {dimension_numbers = #tpu.dot_dimension_numbers<[1], [0], [0], [1], [0, 0, 1, 1], [], []>} : vector<16x32xbf16>, vector<32x128xbf16>, vector<16x128xf32> -> vector<16x128xf32>
    %267 = arith.addf %264, %266 : vector<16x128xf32>
    %268 = vector.extract_strided_slice %267 {offsets = [0, 0], sizes = [16, 32], strides = [1, 1]} : vector<16x128xf32> to vector<16x32xf32>
    %269 = arith.negf %268 : vector<16x32xf32>
    %270 = math.exp %269 : vector<16x32xf32>
    %cst_69 = arith.constant 1.000000e+00 : f32
    %271 = vector.broadcast %cst_69 : f32 to vector<16x32xf32>
    %272 = arith.addf %271, %270 : vector<16x32xf32>
    %273 = arith.divf %271, %272 : vector<16x32xf32>
    %274 = vector.extract_strided_slice %267 {offsets = [0, 32], sizes = [16, 32], strides = [1, 1]} : vector<16x128xf32> to vector<16x32xf32>
    %275 = arith.negf %274 : vector<16x32xf32>
    %276 = math.exp %275 : vector<16x32xf32>
    %cst_70 = arith.constant 1.000000e+00 : f32
    %277 = vector.broadcast %cst_70 : f32 to vector<16x32xf32>
    %278 = arith.addf %277, %276 : vector<16x32xf32>
    %279 = arith.divf %277, %278 : vector<16x32xf32>
    %280 = vector.extract_strided_slice %267 {offsets = [0, 64], sizes = [16, 32], strides = [1, 1]} : vector<16x128xf32> to vector<16x32xf32>
    %281 = math.tanh %280 : vector<16x32xf32>
    %282 = vector.extract_strided_slice %267 {offsets = [0, 96], sizes = [16, 32], strides = [1, 1]} : vector<16x128xf32> to vector<16x32xf32>
    %283 = arith.negf %282 : vector<16x32xf32>
    %284 = math.exp %283 : vector<16x32xf32>
    %cst_71 = arith.constant 1.000000e+00 : f32
    %285 = vector.broadcast %cst_71 : f32 to vector<16x32xf32>
    %286 = arith.addf %285, %284 : vector<16x32xf32>
    %287 = arith.divf %285, %286 : vector<16x32xf32>
    %288 = arith.mulf %279, %261 : vector<16x32xf32>
    %289 = arith.mulf %273, %281 : vector<16x32xf32>
    %290 = arith.addf %288, %289 : vector<16x32xf32>
    %291 = math.tanh %290 : vector<16x32xf32>
    %292 = arith.mulf %287, %291 : vector<16x32xf32>
    %293 = arith.addi %14, %c7_i32 : i32
    %c8_i32_72 = arith.constant 8 : i32
    %294 = arith.cmpi slt, %293, %c8_i32_72 : i32
    %295 = arith.select %294, %292, %260 : vector<16x32xf32>
    %296 = arith.select %294, %290, %261 : vector<16x32xf32>
    %c8_i32_73 = arith.constant 8 : i32
    %c0_74 = arith.constant 0 : index
    %c0_75 = arith.constant 0 : index
    %297 = vector.load %arg10[%c0_74, %c0_75] : memref<16x32xf32, #tpu.memory_space<vmem>>, vector<16x32xf32>
    tpu.vector_store %arg10[%c0_74, %c0_75], %295 {strides = array<i32>} : memref<16x32xf32, #tpu.memory_space<vmem>>, vector<16x32xf32>,
    %c0_76 = arith.constant 0 : index
    %c0_77 = arith.constant 0 : index
    %298 = vector.load %arg11[%c0_76, %c0_77] : memref<16x32xf32, #tpu.memory_space<vmem>>, vector<16x32xf32>
    tpu.vector_store %arg11[%c0_76, %c0_77], %296 {strides = array<i32>} : memref<16x32xf32, #tpu.memory_space<vmem>>, vector<16x32xf32>,
    %c0_i32_78 = arith.constant 0 : i32
    %299 = arith.cmpi eq, %arg1, %c0_i32_78 : i32
    %300 = arith.extui %299 : i1 to i32
    %c0_i32_79 = arith.constant 0 : i32
    %301 = arith.cmpi ne, %300, %c0_i32_79 : i32
    scf.if %301 {
      %302 = arith.truncf %295 : vector<16x32xf32> to vector<16x32xbf16>
      %c0_80 = arith.constant 0 : index
      %c0_81 = arith.constant 0 : index
      %303 = vector.load %arg6[%c0_80, %c0_81] : memref<32x128xbf16, #tpu.memory_space<vmem>>, vector<32x128xbf16>
      %cst_82 = arith.constant dense<0.000000e+00> : vector<16x128xf32>
      %304 = tpu.matmul %302, %303, %cst_82 {dimension_numbers = #tpu.dot_dimension_numbers<[1], [0], [0], [1], [0, 0, 1, 1], [], []>} : vector<16x32xbf16>, vector<32x128xbf16>, vector<16x128xf32> -> vector<16x128xf32>
      %c0_83 = arith.constant 0 : index
      %c0_84 = arith.constant 0 : index
      %305 = vector.load %arg7[%c0_83, %c0_84] : memref<1x128xf32, #tpu.memory_space<vmem>>, vector<1x128xf32>
      %306 = vector.broadcast %305 : vector<1x128xf32> to vector<16x128xf32>
      %307 = arith.addf %304, %306 : vector<16x128xf32>
      %c0_85 = arith.constant 0 : index
      %c0_86 = arith.constant 0 : index
      %308 = vector.load %arg8[%c0_85, %c0_86] : memref<16x128xf32, #tpu.memory_space<vmem>>, vector<16x128xf32>
      tpu.vector_store %arg8[%c0_85, %c0_86], %307 {strides = array<i32>} : memref<16x128xf32, #tpu.memory_space<vmem>>, vector<16x128xf32>,
    } else {
    }
    return
  }
  func.func @transform_0(%arg0: i32, %arg1: i32) -> (i32, i32, i32) {
    %c0_i32 = arith.constant 0 : i32
    %c0_i32_0 = arith.constant 0 : i32
    return %arg1, %arg0, %c0_i32 : i32, i32, i32
  }
  func.func @transform_1(%arg0: i32, %arg1: i32) -> (i32, i32) {
    %c0_i32 = arith.constant 0 : i32
    %c0_i32_0 = arith.constant 0 : i32
    %c0_i32_1 = arith.constant 0 : i32
    return %c0_i32, %c0_i32_0 : i32, i32
  }
  func.func @transform_2(%arg0: i32, %arg1: i32) -> (i32, i32) {
    %c0_i32 = arith.constant 0 : i32
    %c0_i32_0 = arith.constant 0 : i32
    %c0_i32_1 = arith.constant 0 : i32
    return %c0_i32, %c0_i32_0 : i32, i32
  }
  func.func @transform_3(%arg0: i32, %arg1: i32) -> (i32, i32) {
    %c0_i32 = arith.constant 0 : i32
    %c0_i32_0 = arith.constant 0 : i32
    %c0_i32_1 = arith.constant 0 : i32
    return %c0_i32, %c0_i32_0 : i32, i32
  }
  func.func @transform_4(%arg0: i32, %arg1: i32) -> (i32, i32) {
    %c0_i32 = arith.constant 0 : i32
    %c0_i32_0 = arith.constant 0 : i32
    %c0_i32_1 = arith.constant 0 : i32
    return %c0_i32, %c0_i32_0 : i32, i32
  }
  func.func @transform_5(%arg0: i32, %arg1: i32) -> (i32, i32) {
    %c0_i32 = arith.constant 0 : i32
    %c0_i32_0 = arith.constant 0 : i32
    %c0_i32_1 = arith.constant 0 : i32
    return %c0_i32, %c0_i32_0 : i32, i32
  }
  func.func @transform_6(%arg0: i32, %arg1: i32) -> (i32, i32) {
    %c0_i32 = arith.constant 0 : i32
    %c0_i32_0 = arith.constant 0 : i32
    return %arg0, %c0_i32 : i32, i32
  }
}

</mosaic_0001>

<llo_original>
// kernel: tpu_custom_call.1
$region0: #{tpu_custom_call.1}
  #allocation0 [shape = 'u32[]', space=smem, size = 0x4, offset = 0x4, fixed_abs, tag = 'smem constant byte address 0x4 - core index']
  #allocation1 [shape = 'u32[72,128]{1,0:T(1,128)}', space=vmem, size = 0x9000, scoped, tag = 'internal scratch']
  #allocation2 [shape = 'f32[8,16,128]{2,1,0:T(8,128)}', space=vmem, size = 0x10000, scoped, tag = 'scratch operand']
  #allocation3 [shape = 'f32[16,32]{1,0:T(8,128)}', space=vmem, size = 0x2000, scoped, tag = 'scratch operand']
  #allocation4 [shape = 'f32[16,32]{1,0:T(8,128)}', space=vmem, size = 0x2000, scoped, tag = 'scratch operand']
  %s0 = inlined_call_operand.hbm [shape: bf16[8,16,128], index: 0, kind: input, shape index: {}]
  %s1 = inlined_call_operand.hbm [shape: bf16[128,128], index: 1, kind: input, shape index: {}]
  %s2 = inlined_call_operand.hbm [shape: bf16[32,128], index: 2, kind: input, shape index: {}]
  %s3 = inlined_call_operand.vmem [shape: f32[1,128], index: 3, kind: input, shape index: {}]
  %s4 = inlined_call_operand.hbm [shape: bf16[32,128], index: 4, kind: input, shape index: {}]
  %s5 = inlined_call_operand.vmem [shape: f32[1,128], index: 5, kind: input, shape index: {}]
  %s6 = inlined_call_operand.hbm [shape: f32[16,128], index: 6, kind: output, shape index: {}]
  %s7 = sld [smem:[#allocation0]]
  $region58: #{tpu_custom_call.1} parent=0
    _
  %s9 = ssub.s32 1, %s7
  %s10 = scalar_select 0, %s9, %s7
  $region1: #{tpu_custom_call.1} parent=0
    #allocation5 [shape = 'u8[32768]{0}', space=vmem, size = 0x8000, scoped, tag = 'input window, operand 0, single buffered']
    #allocation6 [shape = 's32[1]{0}', space=sflag, size = 0x4, scoped, tag = 'scoped memory for tpu_custom_call.1']
    #allocation7 [shape = 's32[1]{0}', space=sflag, size = 0x4, scoped, tag = 'scoped memory for tpu_custom_call.1']
    #allocation8 [shape = 'u8[32768]{0}', space=vmem, size = 0x8000, scoped, tag = 'input window, operand 1, single buffered']
    #allocation9 [shape = 's32[1]{0}', space=sflag, size = 0x4, scoped, tag = 'scoped memory for tpu_custom_call.1']
    #allocation10 [shape = 'u8[8192]{0}', space=vmem, size = 0x2000, scoped, tag = 'input window, operand 2, single buffered']
    #allocation11 [shape = 'u8[8192]{0}', space=vmem, size = 0x2000, scoped, tag = 'input window, operand 4, single buffered']
    #allocation12 [shape = 's32[1]{0}', space=sflag, size = 0x4, scoped, tag = 'scoped memory for tpu_custom_call.1']
    #allocation13 [shape = 'u8[8192]{0}', space=vmem, size = 0x2000, scoped, tag = 'output window, operand 0, single buffered']
    %11 = vsyncpa [#allocation6], 0
    %12 = vsyncpa [#allocation9], 0
    %13 = vsyncpa [#allocation12], 0
    %14 = vsyncpa [#allocation7], 0
    // Predicated region
    $region2: #{tpu_custom_call.1} parent=1 // pred_check
      _
    $region3: #{tpu_custom_call.1} parent=1 // pred_check_branch
      %16 = sbr.rel (0) target = $region5
    $region4: #{tpu_custom_call.1} parent=1 // pred_region
      %18 = vsyncadd [#allocation6], 0
      %s19 = sshll.u32 %s0, 4
      %s20 = int_to_ptr.hbm [resolvable:$true] %s19
      %s21 = sshll.u32 [#allocation5], 4
      %s22 = int_to_ptr.vmem [resolvable:$true] %s21
      %27 = dma.hbm_to_vmem [thread:$0]  %s20, 1024, %s22, [#allocation6], 64, 64, 4
    $region5: #{tpu_custom_call.1} parent=1 // pred_fallthru
      _
    // Predicated region
    $region6: #{tpu_custom_call.1} parent=1 // pred_check
      _
    $region7: #{tpu_custom_call.1} parent=1 // pred_check_branch
      %29 = sbr.rel (0) target = $region9
    $region8: #{tpu_custom_call.1} parent=1 // pred_region
      %31 = vsyncadd [#allocation9], 0
      %s32 = sshll.u32 %s1, 4
      %s33 = int_to_ptr.hbm [resolvable:$true] %s32
      %s34 = sshll.u32 [#allocation8], 4
      %s35 = int_to_ptr.vmem [resolvable:$true] %s34
      %40 = dma.hbm_to_vmem [thread:$0]  %s33, 1024, %s35, [#allocation9], 64, 64, 4
    $region9: #{tpu_custom_call.1} parent=1 // pred_fallthru
      _
    // Predicated region
    $region10: #{tpu_custom_call.1} parent=1 // pred_check
      _
    $region11: #{tpu_custom_call.1} parent=1 // pred_check_branch
      %42 = sbr.rel (0) target = $region13
    $region12: #{tpu_custom_call.1} parent=1 // pred_region
      %44 = vsyncadd [#allocation9], 0
      %s45 = sshll.u32 %s2, 4
      %s46 = int_to_ptr.hbm [resolvable:$true] %s45
      %s47 = sshll.u32 [#allocation10], 4
      %s48 = int_to_ptr.vmem [resolvable:$true] %s47
      %53 = dma.hbm_to_vmem [thread:$0]  %s46, 256, %s48, [#allocation9], 64, 64, 4
    $region13: #{tpu_custom_call.1} parent=1 // pred_fallthru
      _
    // Predicated region
    $region14: #{tpu_custom_call.1} parent=1 // pred_check
      _
    $region15: #{tpu_custom_call.1} parent=1 // pred_check_branch
      %55 = sbr.rel (0) target = $region17
    $region16: #{tpu_custom_call.1} parent=1 // pred_region
      _
    $region17: #{tpu_custom_call.1} parent=1 // pred_fallthru
      _
    // Predicated region
    $region18: #{tpu_custom_call.1} parent=1 // pred_check
      _
    $region19: #{tpu_custom_call.1} parent=1 // pred_check_branch
      %57 = sbr.rel (0) target = $region21
    $region20: #{tpu_custom_call.1} parent=1 // pred_region
      %59 = vsyncadd [#allocation12], 0
      %s60 = sshll.u32 %s4, 4
      %s61 = int_to_ptr.hbm [resolvable:$true] %s60
      %s62 = sshll.u32 [#allocation11], 4
      %s63 = int_to_ptr.vmem [resolvable:$true] %s62
      %68 = dma.hbm_to_vmem [thread:$0]  %s61, 256, %s63, [#allocation12], 64, 64, 4
    $region21: #{tpu_custom_call.1} parent=1 // pred_fallthru
      _
    // Predicated region
    $region22: #{tpu_custom_call.1} parent=1 // pred_check
      _
    $region23: #{tpu_custom_call.1} parent=1 // pred_check_branch
      %70 = sbr.rel (0) target = $region25
    $region24: #{tpu_custom_call.1} parent=1 // pred_region
      _
    $region25: #{tpu_custom_call.1} parent=1 // pred_fallthru
      _
    // Predicated region
    $region26: #{tpu_custom_call.1} parent=1 // pred_check
      _
    $region27: #{tpu_custom_call.1} parent=1 // pred_check_branch
      %72 = sbr.rel (0) target = $region29
    $region28: #{tpu_custom_call.1} parent=1 // pred_region
      %74 = dma.done [#allocation6], 1024
    $region29: #{tpu_custom_call.1} parent=1 // pred_fallthru
      _
    // Predicated region
    $region30: #{tpu_custom_call.1} parent=1 // pred_check
      _
    $region31: #{tpu_custom_call.1} parent=1 // pred_check_branch
      %76 = sbr.rel (0) target = $region33
    $region32: #{tpu_custom_call.1} parent=1 // pred_region
      %78 = dma.done [#allocation9], 1024
    $region33: #{tpu_custom_call.1} parent=1 // pred_fallthru
      _
    // Predicated region
    $region34: #{tpu_custom_call.1} parent=1 // pred_check
      _
    $region35: #{tpu_custom_call.1} parent=1 // pred_check_branch
      %80 = sbr.rel (0) target = $region37
    $region36: #{tpu_custom_call.1} parent=1 // pred_region
      %82 = dma.done [#allocation9], 256
    $region37: #{tpu_custom_call.1} parent=1 // pred_fallthru
      _
    // Predicated region
    $region38: #{tpu_custom_call.1} parent=1 // pred_check
      _
    $region39: #{tpu_custom_call.1} parent=1 // pred_check_branch
      %84 = sbr.rel (0) target = $region41
    $region40: #{tpu_custom_call.1} parent=1 // pred_region
      %86 = dma.done [#allocation12], 256
    $region41: #{tpu_custom_call.1} parent=1 // pred_fallthru
      _
    %p88 = scmp.eq.s32.totalorder 0, 0
    // Predicated region
    $region42: #{tpu_custom_call.1} parent=1 // pred_check
      %p89 = pneg %p88
    $region43: #{tpu_custom_call.1} parent=1 // pred_check_branch
      %91 = sbr.rel (%p89) target = $region45
    $region44: #{tpu_custom_call.1} parent=1 // pred_region
      %vm92 = vcmask 261120
      %93 = vst.msk [vmem:[#allocation3] sm:$0xff] %vm92, 0.0
      %94 = vst.msk [vmem:[#allocation3 + $0x8] sm:$0xff] %vm92, 0.0
      %95 = vst.msk [vmem:[#allocation4] sm:$0xff] %vm92, 0.0
      %96 = vst.msk [vmem:[#allocation4 + $0x8] sm:$0xff] %vm92, 0.0
    $region45: #{tpu_custom_call.1} parent=1 // pred_fallthru
      _
    %v97 = vld [vmem:[#allocation5] sm:$0xf]
    %v98 = vld [vmem:[#allocation5 + $0x4] sm:$0xf]
    %v99 = vld [vmem:[#allocation5 + $0x8] sm:$0xf]
    %v100 = vld [vmem:[#allocation5 + $0xc] sm:$0xf]
    %v101 = vld [vmem:[#allocation5 + $0x10] sm:$0xf]
    %v102 = vld [vmem:[#allocation5 + $0x14] sm:$0xf]
    %v103 = vld [vmem:[#allocation5 + $0x18] sm:$0xf]
    %v104 = vld [vmem:[#allocation5 + $0x1c] sm:$0xf]
    %v105 = vld [vmem:[#allocation5 + $0x20] sm:$0xf]
    %v106 = vld [vmem:[#allocation5 + $0x24] sm:$0xf]
    %v107 = vld [vmem:[#allocation5 + $0x28] sm:$0xf]
    %v108 = vld [vmem:[#allocation5 + $0x2c] sm:$0xf]
    %v109 = vld [vmem:[#allocation5 + $0x30] sm:$0xf]
    %v110 = vld [vmem:[#allocation5 + $0x34] sm:$0xf]
    %v111 = vld [vmem:[#allocation5 + $0x38] sm:$0xf]
    %v112 = vld [vmem:[#allocation5 + $0x3c] sm:$0xf]
    %v113 = vld [vmem:[#allocation8] sm:$0xf]
    %v114 = vld [vmem:[#allocation8 + $0x4] sm:$0xf]
    %v115 = vld [vmem:[#allocation8 + $0x8] sm:$0xf]
    %v116 = vld [vmem:[#allocation8 + $0xc] sm:$0xf]
    %v117 = vld [vmem:[#allocation8 + $0x10] sm:$0xf]
    %v118 = vld [vmem:[#allocation8 + $0x14] sm:$0xf]
    %v119 = vld [vmem:[#allocation8 + $0x18] sm:$0xf]
    %v120 = vld [vmem:[#allocation8 + $0x1c] sm:$0xf]
    %v121 = vld [vmem:[#allocation8 + $0x20] sm:$0xf]
    %v122 = vld [vmem:[#allocation8 + $0x24] sm:$0xf]
    %v123 = vld [vmem:[#allocation8 + $0x28] sm:$0xf]
    %v124 = vld [vmem:[#allocation8 + $0x2c] sm:$0xf]
    %v125 = vld [vmem:[#allocation8 + $0x30] sm:$0xf]
    %v126 = vld [vmem:[#allocation8 + $0x34] sm:$0xf]
    %v127 = vld [vmem:[#allocation8 + $0x38] sm:$0xf]
    %v128 = vld [vmem:[#allocation8 + $0x3c] sm:$0xf]
    %v145 = vunpack.c.l.b16 %v97
    %v146 = vunpack.c.l.b16 %v98
    %v147 = vunpack.c.l.b16 %v99
    %v148 = vunpack.c.l.b16 %v100
    %v149 = vunpack.c.l.b16 %v101
    %v150 = vunpack.c.l.b16 %v102
    %v151 = vunpack.c.l.b16 %v103
    %v152 = vunpack.c.l.b16 %v104
    %v153 = vunpack.c.l.b16 %v105
    %v154 = vunpack.c.l.b16 %v106
    %v155 = vunpack.c.l.b16 %v107
    %v156 = vunpack.c.l.b16 %v108
    %v157 = vunpack.c.l.b16 %v109
    %v158 = vunpack.c.l.b16 %v110
    %v159 = vunpack.c.l.b16 %v111
    %v160 = vunpack.c.l.b16 %v112
    %v161 = vpack.c.b16 %v146, %v145
    %v162 = vpack.c.b16 %v148, %v147
    %v163 = vpack.c.b16 %v150, %v149
    %v164 = vpack.c.b16 %v152, %v151
    %v165 = vpack.c.b16 %v154, %v153
    %v166 = vpack.c.b16 %v156, %v155
    %v167 = vpack.c.b16 %v158, %v157
    %v168 = vpack.c.b16 %v160, %v159
    %v193 = vunpack.c.l.b16 %v113
    %v194 = vunpack.c.l.b16 %v114
    %v195 = vunpack.c.l.b16 %v115
    %v196 = vunpack.c.l.b16 %v116
    %v197 = vunpack.c.l.b16 %v117
    %v198 = vunpack.c.l.b16 %v118
    %v199 = vunpack.c.l.b16 %v119
    %v200 = vunpack.c.l.b16 %v120
    %v201 = vunpack.c.l.b16 %v121
    %v202 = vunpack.c.l.b16 %v122
    %v203 = vunpack.c.l.b16 %v123
    %v204 = vunpack.c.l.b16 %v124
    %v205 = vunpack.c.l.b16 %v125
    %v206 = vunpack.c.l.b16 %v126
    %v207 = vunpack.c.l.b16 %v127
    %v208 = vunpack.c.l.b16 %v128
    %v209 = vpack.c.b16 %v194, %v193
    %v210 = vpack.c.b16 %v196, %v195
    %v211 = vpack.c.b16 %v198, %v197
    %v212 = vpack.c.b16 %v200, %v199
    %v213 = vpack.c.b16 %v202, %v201
    %v214 = vpack.c.b16 %v204, %v203
    %v215 = vpack.c.b16 %v206, %v205
    %v216 = vpack.c.b16 %v208, %v207
    %225 = vmatpush.bf16.msra.mxu0 %v216
    %226 = vmatpush.bf16.msra.mxu0 %v215
    %227 = vmatpush.bf16.msra.mxu0 %v214
    %228 = vmatpush.bf16.msra.mxu0 %v213
    %229 = vmatpush.bf16.msra.mxu0 %v212
    %230 = vmatpush.bf16.msra.mxu0 %v211
    %231 = vmatpush.bf16.msra.mxu0 %v210
    %232 = vmatpush.bf16.msra.mxu0 %v209
    %233 = vmatmul.bf16.gmra.mxu0 %v161
    %v234 = vpop.f32.mrf.mxu0
    %v235 = vadd.f32 0.0, %v234
    %v236 = vpop.f32.mrf.mxu0
    %v237 = vadd.f32 0.0, %v236
    %238 = vmatmul.bf16.gmra.mxu0 %v162
    %v239 = vpop.f32.mrf.mxu0
    %v240 = vadd.f32 0.0, %v239
    %v241 = vpop.f32.mrf.mxu0
    %v242 = vadd.f32 0.0, %v241
    %243 = vmatmul.bf16.gmra.mxu0 %v163
    %v244 = vpop.f32.mrf.mxu0
    %v245 = vadd.f32 0.0, %v244
    %v246 = vpop.f32.mrf.mxu0
    %v247 = vadd.f32 0.0, %v246
    %248 = vmatmul.bf16.gmra.mxu0 %v164
    %v249 = vpop.f32.mrf.mxu0
    %v250 = vadd.f32 0.0, %v249
    %v251 = vpop.f32.mrf.mxu0
    %v252 = vadd.f32 0.0, %v251
    %253 = vmatmul.bf16.gmra.mxu0 %v165
    %v254 = vpop.f32.mrf.mxu0
    %v255 = vadd.f32 0.0, %v254
    %v256 = vpop.f32.mrf.mxu0
    %v257 = vadd.f32 0.0, %v256
    %258 = vmatmul.bf16.gmra.mxu0 %v166
    %v259 = vpop.f32.mrf.mxu0
    %v260 = vadd.f32 0.0, %v259
    %v261 = vpop.f32.mrf.mxu0
    %v262 = vadd.f32 0.0, %v261
    %263 = vmatmul.bf16.gmra.mxu0 %v167
    %v264 = vpop.f32.mrf.mxu0
    %v265 = vadd.f32 0.0, %v264
    %v266 = vpop.f32.mrf.mxu0
    %v267 = vadd.f32 0.0, %v266
    %268 = vmatmul.bf16.gmra.mxu0 %v168
    %v269 = vpop.f32.mrf.mxu0
    %v270 = vadd.f32 0.0, %v269
    %v271 = vpop.f32.mrf.mxu0
    %v272 = vadd.f32 0.0, %v271
    %273 = vdwg.mxu0
    %v274 = vld [vmem:[%s3] sm:$0x1]
    %v276 = vperm.slane %v274, 0
    %v278 = vadd.f32 %v235, %v276
    %v279 = vadd.f32 %v237, %v276
    %v280 = vadd.f32 %v240, %v276
    %v281 = vadd.f32 %v242, %v276
    %v282 = vadd.f32 %v245, %v276
    %v283 = vadd.f32 %v247, %v276
    %v284 = vadd.f32 %v250, %v276
    %v285 = vadd.f32 %v252, %v276
    %v286 = vadd.f32 %v255, %v276
    %v287 = vadd.f32 %v257, %v276
    %v288 = vadd.f32 %v260, %v276
    %v289 = vadd.f32 %v262, %v276
    %v290 = vadd.f32 %v265, %v276
    %v291 = vadd.f32 %v267, %v276
    %v292 = vadd.f32 %v270, %v276
    %v293 = vadd.f32 %v272, %v276
    %294 = vst [vmem:[#allocation2] sm:$0xff] %v278
    %295 = vst [vmem:[#allocation2 + $0x8] sm:$0xff] %v279
    %296 = vst [vmem:[#allocation2 + $0x10] sm:$0xff] %v280
    %297 = vst [vmem:[#allocation2 + $0x18] sm:$0xff] %v281
    %298 = vst [vmem:[#allocation2 + $0x20] sm:$0xff] %v282
    %299 = vst [vmem:[#allocation2 + $0x28] sm:$0xff] %v283
    %300 = vst [vmem:[#allocation2 + $0x30] sm:$0xff] %v284
    %301 = vst [vmem:[#allocation2 + $0x38] sm:$0xff] %v285
    %302 = vst [vmem:[#allocation2 + $0x40] sm:$0xff] %v286
    %303 = vst [vmem:[#allocation2 + $0x48] sm:$0xff] %v287
    %304 = vst [vmem:[#allocation2 + $0x50] sm:$0xff] %v288
    %305 = vst [vmem:[#allocation2 + $0x58] sm:$0xff] %v289
    %306 = vst [vmem:[#allocation2 + $0x60] sm:$0xff] %v290
    %307 = vst [vmem:[#allocation2 + $0x68] sm:$0xff] %v291
    %308 = vst [vmem:[#allocation2 + $0x70] sm:$0xff] %v292
    %309 = vst [vmem:[#allocation2 + $0x78] sm:$0xff] %v293
    %v310 = vld [vmem:[#allocation10] sm:$0xf]
    %v311 = vld [vmem:[#allocation10 + $0x4] sm:$0xf]
    %v312 = vld [vmem:[#allocation10 + $0x8] sm:$0xf]
    %v313 = vld [vmem:[#allocation10 + $0xc] sm:$0xf]
    %s314 = smul.u32 0, 8
    %v315 = vld [vmem:[#allocation3] sm:$0xff]
    %v316 = vld [vmem:[#allocation3 + $0x8] sm:$0xff]
    %v317 = vld [vmem:[#allocation4] sm:$0xff]
    %v318 = vld [vmem:[#allocation4 + $0x8] sm:$0xff]
    %v319 = vld [vmem:[#allocation2] sm:$0xff]
    %v320 = vld [vmem:[#allocation2 + $0x8] sm:$0xff]
    %v321 = vpack.c.bf16 %v316, %v315
    %v326 = vunpack.c.l.b16 %v310
    %v327 = vunpack.c.l.b16 %v311
    %v328 = vunpack.c.l.b16 %v312
    %v329 = vunpack.c.l.b16 %v313
    %v330 = vpack.c.b16 %v327, %v326
    %v331 = vpack.c.b16 %v329, %v328
    %vm334 = vcmask 261120
    %v336 = vsel %vm334, %v321, 0
    %338 = vmatpush.bf16.msra.mxu0 0
    %339 = vmatpush.bf16.msra.mxu0 0
    %340 = vmatpush.bf16.msra.mxu0 0
    %341 = vmatpush.bf16.msra.mxu0 0
    %342 = vmatpush.bf16.msra.mxu0 0
    %343 = vmatpush.bf16.msra.mxu0 0
    %344 = vmatpush.bf16.msra.mxu0 %v331
    %345 = vmatpush.bf16.msra.mxu0 %v330
    %346 = vmatmul.bf16.gmra.mxu0 %v336
    %v347 = vpop.f32.mrf.mxu0
    %v348 = vadd.f32 0.0, %v347
    %v349 = vpop.f32.mrf.mxu0
    %v350 = vadd.f32 0.0, %v349
    %351 = vdwg.mxu0
    %v352 = vadd.f32 %v319, %v348
    %v353 = vadd.f32 %v320, %v350
    %v354 = vxor.u32 %v352, 2147483648
    %v355 = vxor.u32 %v353, 2147483648
    %v356 = vmul.f32 %v354, 1.442695
    %v357 = vpow.pop %v356
    %v358 = vmul.f32 %v355, 1.442695
    %v359 = vpow.pop %v358
    %v360 = vadd.f32 %v357, 1.0
    %v361 = vadd.f32 %v359, 1.0
    %v362 = vrcp.pop %v360
    %v363 = vmul.f32 %v360, %v362
    %v364 = vsub.f32 1.0, %v363
    %v365 = vmul.f32 %v362, %v364
    %v366 = vadd.f32 %v362, %v365
    %vm367 = vweird.f32 %v360
    %vm368 = vweird.f32 %v362
    %vm369 = vmor %vm367, %vm368
    %v370 = vsel %vm369, %v362, %v366
    %v371 = vand.u32 2147483647, %v360
    %vm372 = vcmp.eq.f32.partialorder %v371, 8.507059e+37
    %v373 = vand.u32 %v360, 2147483648
    %v374 = vor.u32 1.1754944e-38, %v373
    %v375 = vsel %vm372, %v374, %v370
    %v376 = vmul.f32 1.0, %v375
    %v377 = vrcp.pop %v361
    %v378 = vmul.f32 %v361, %v377
    %v379 = vsub.f32 1.0, %v378
    %v380 = vmul.f32 %v377, %v379
    %v381 = vadd.f32 %v377, %v380
    %vm382 = vweird.f32 %v361
    %vm383 = vweird.f32 %v377
    %vm384 = vmor %vm382, %vm383
    %v385 = vsel %vm384, %v377, %v381
    %v386 = vand.u32 2147483647, %v361
    %vm387 = vcmp.eq.f32.partialorder %v386, 8.507059e+37
    %v388 = vand.u32 %v361, 2147483648
    %v389 = vor.u32 1.1754944e-38, %v388
    %v390 = vsel %vm387, %v389, %v385
    %v391 = vmul.f32 1.0, %v390
    %v392 = vtanh.pop %v352
    %v393 = vtanh.pop %v353
    %396 = vrot.lane.b32.xlu0 %v317, 32
    %v397 = vpop.permute.xlu0 %396
    %398 = vrot.lane.b32.xlu0 %v318, 32
    %v399 = vpop.permute.xlu0 %398
    %v402 = vmul.f32 %v376, %v397
    %v403 = vmul.f32 %v391, %v399
    %406 = vrot.lane.b32.xlu0 %v392, 64
    %v407 = vpop.permute.xlu0 %406
    %408 = vrot.lane.b32.xlu0 %v393, 64
    %v409 = vpop.permute.xlu0 %408
    %v412 = vmul.f32 %v376, %v407
    %v413 = vmul.f32 %v391, %v409
    %416 = vrot.lane.b32.xlu0 %v412, 32
    %v417 = vpop.permute.xlu0 %416
    %418 = vrot.lane.b32.xlu0 %v413, 32
    %v419 = vpop.permute.xlu0 %418
    %v422 = vadd.f32 %v402, %v417
    %v423 = vadd.f32 %v403, %v419
    %v424 = vtanh.pop %v422
    %v425 = vtanh.pop %v423
    %428 = vrot.lane.b32.xlu0 %v424, 64
    %v429 = vpop.permute.xlu0 %428
    %430 = vrot.lane.b32.xlu0 %v425, 64
    %v431 = vpop.permute.xlu0 %430
    %v434 = vmul.f32 %v376, %v429
    %v435 = vmul.f32 %v391, %v431
    %p436 = scmp.lt.s32.totalorder %s314, 8
    %s437 = scalar_select %p436, 1, 0
    %v438 = vstv %s437
    %vm439 = vcmp.eq.s32.totalorder %v438, 1
    %442 = vrot.lane.b32.xlu0 %v315, 96
    %v443 = vpop.permute.xlu0 %442
    %444 = vrot.lane.b32.xlu0 %v316, 96
    %v445 = vpop.permute.xlu0 %444
    %v448 = vsel %vm439, %v434, %v443
    %v449 = vsel %vm439, %v435, %v445
    %v450 = vsel %vm439, %v422, %v397
    %v451 = vsel %vm439, %v423, %v399
    %s452 = scalar_lea.vmem [#allocation2], 16
    %v453 = vld [vmem:[%s452] sm:$0xff]
    %v454 = vld [vmem:[%s452 + $0x8] sm:$0xff]
    %v455 = vpack.c.bf16 %v449, %v448
    %457 = vrot.lane.b32.xlu0 %v455, 32
    %v458 = vpop.permute.xlu0 %457
    %v460 = vsel %vm334, %v458, 0
    %462 = vmatpush.bf16.msra.mxu0 0
    %463 = vmatpush.bf16.msra.mxu0 0
    %464 = vmatpush.bf16.msra.mxu0 0
    %465 = vmatpush.bf16.msra.mxu0 0
    %466 = vmatpush.bf16.msra.mxu0 0
    %467 = vmatpush.bf16.msra.mxu0 0
    %468 = vmatpush.bf16.msra.mxu0 %v331
    %469 = vmatpush.bf16.msra.mxu0 %v330
    %470 = vmatmul.bf16.gmra.mxu0 %v460
    %v471 = vpop.f32.mrf.mxu0
    %v472 = vadd.f32 0.0, %v471
    %v473 = vpop.f32.mrf.mxu0
    %v474 = vadd.f32 0.0, %v473
    %475 = vdwg.mxu0
    %v476 = vadd.f32 %v453, %v472
    %v477 = vadd.f32 %v454, %v474
    %v478 = vxor.u32 %v476, 2147483648
    %v479 = vxor.u32 %v477, 2147483648
    %v480 = vmul.f32 %v478, 1.442695
    %v481 = vpow.pop %v480
    %v482 = vmul.f32 %v479, 1.442695
    %v483 = vpow.pop %v482
    %v484 = vadd.f32 %v481, 1.0
    %v485 = vadd.f32 %v483, 1.0
    %v486 = vrcp.pop %v484
    %v487 = vmul.f32 %v484, %v486
    %v488 = vsub.f32 1.0, %v487
    %v489 = vmul.f32 %v486, %v488
    %v490 = vadd.f32 %v486, %v489
    %vm491 = vweird.f32 %v484
    %vm492 = vweird.f32 %v486
    %vm493 = vmor %vm491, %vm492
    %v494 = vsel %vm493, %v486, %v490
    %v495 = vand.u32 2147483647, %v484
    %vm496 = vcmp.eq.f32.partialorder %v495, 8.507059e+37
    %v497 = vand.u32 %v484, 2147483648
    %v498 = vor.u32 1.1754944e-38, %v497
    %v499 = vsel %vm496, %v498, %v494
    %v500 = vmul.f32 1.0, %v499
    %v501 = vrcp.pop %v485
    %v502 = vmul.f32 %v485, %v501
    %v503 = vsub.f32 1.0, %v502
    %v504 = vmul.f32 %v501, %v503
    %v505 = vadd.f32 %v501, %v504
    %vm506 = vweird.f32 %v485
    %vm507 = vweird.f32 %v501
    %vm508 = vmor %vm506, %vm507
    %v509 = vsel %vm508, %v501, %v505
    %v510 = vand.u32 2147483647, %v485
    %vm511 = vcmp.eq.f32.partialorder %v510, 8.507059e+37
    %v512 = vand.u32 %v485, 2147483648
    %v513 = vor.u32 1.1754944e-38, %v512
    %v514 = vsel %vm511, %v513, %v509
    %v515 = vmul.f32 1.0, %v514
    %v516 = vtanh.pop %v476
    %v517 = vtanh.pop %v477
    %v518 = vmul.f32 %v500, %v450
    %v519 = vmul.f32 %v515, %v451
    %522 = vrot.lane.b32.xlu0 %v516, 64
    %v523 = vpop.permute.xlu0 %522
    %524 = vrot.lane.b32.xlu0 %v517, 64
    %v525 = vpop.permute.xlu0 %524
    %v528 = vmul.f32 %v500, %v523
    %v529 = vmul.f32 %v515, %v525
    %532 = vrot.lane.b32.xlu0 %v528, 32
    %v533 = vpop.permute.xlu0 %532
    %534 = vrot.lane.b32.xlu0 %v529, 32
    %v535 = vpop.permute.xlu0 %534
    %v538 = vadd.f32 %v518, %v533
    %v539 = vadd.f32 %v519, %v535
    %v540 = vtanh.pop %v538
    %v541 = vtanh.pop %v539
    %544 = vrot.lane.b32.xlu0 %v540, 64
    %v545 = vpop.permute.xlu0 %544
    %546 = vrot.lane.b32.xlu0 %v541, 64
    %v547 = vpop.permute.xlu0 %546
    %v550 = vmul.f32 %v500, %v545
    %v551 = vmul.f32 %v515, %v547
    %s552 = sadd.s32 %s314, 1
    %p553 = scmp.lt.s32.totalorder %s552, 8
    %s554 = scalar_select %p553, 1, 0
    %v555 = vstv %s554
    %vm556 = vcmp.eq.s32.totalorder %v555, 1
    %v557 = vsel %vm556, %v550, %v448
    %v558 = vsel %vm556, %v551, %v449
    %v559 = vsel %vm556, %v538, %v450
    %v560 = vsel %vm556, %v539, %v451
    %s561 = scalar_lea.vmem [#allocation2], 32
    %v562 = vld [vmem:[%s561] sm:$0xff]
    %v563 = vld [vmem:[%s561 + $0x8] sm:$0xff]
    %v564 = vpack.c.bf16 %v558, %v557
    %566 = vrot.lane.b32.xlu0 %v564, 32
    %v567 = vpop.permute.xlu0 %566
    %v569 = vsel %vm334, %v567, 0
    %571 = vmatpush.bf16.msra.mxu0 0
    %572 = vmatpush.bf16.msra.mxu0 0
    %573 = vmatpush.bf16.msra.mxu0 0
    %574 = vmatpush.bf16.msra.mxu0 0
    %575 = vmatpush.bf16.msra.mxu0 0
    %576 = vmatpush.bf16.msra.mxu0 0
    %577 = vmatpush.bf16.msra.mxu0 %v331
    %578 = vmatpush.bf16.msra.mxu0 %v330
    %579 = vmatmul.bf16.gmra.mxu0 %v569
    %v580 = vpop.f32.mrf.mxu0
    %v581 = vadd.f32 0.0, %v580
    %v582 = vpop.f32.mrf.mxu0
    %v583 = vadd.f32 0.0, %v582
    %584 = vdwg.mxu0
    %v585 = vadd.f32 %v562, %v581
    %v586 = vadd.f32 %v563, %v583
    %v587 = vxor.u32 %v585, 2147483648
    %v588 = vxor.u32 %v586, 2147483648
    %v589 = vmul.f32 %v587, 1.442695
    %v590 = vpow.pop %v589
    %v591 = vmul.f32 %v588, 1.442695
    %v592 = vpow.pop %v591
    %v593 = vadd.f32 %v590, 1.0
    %v594 = vadd.f32 %v592, 1.0
    %v595 = vrcp.pop %v593
    %v596 = vmul.f32 %v593, %v595
    %v597 = vsub.f32 1.0, %v596
    %v598 = vmul.f32 %v595, %v597
    %v599 = vadd.f32 %v595, %v598
    %vm600 = vweird.f32 %v593
    %vm601 = vweird.f32 %v595
    %vm602 = vmor %vm600, %vm601
    %v603 = vsel %vm602, %v595, %v599
    %v604 = vand.u32 2147483647, %v593
    %vm605 = vcmp.eq.f32.partialorder %v604, 8.507059e+37
    %v606 = vand.u32 %v593, 2147483648
    %v607 = vor.u32 1.1754944e-38, %v606
    %v608 = vsel %vm605, %v607, %v603
    %v609 = vmul.f32 1.0, %v608
    %v610 = vrcp.pop %v594
    %v611 = vmul.f32 %v594, %v610
    %v612 = vsub.f32 1.0, %v611
    %v613 = vmul.f32 %v610, %v612
    %v614 = vadd.f32 %v610, %v613
    %vm615 = vweird.f32 %v594
    %vm616 = vweird.f32 %v610
    %vm617 = vmor %vm615, %vm616
    %v618 = vsel %vm617, %v610, %v614
    %v619 = vand.u32 2147483647, %v594
    %vm620 = vcmp.eq.f32.partialorder %v619, 8.507059e+37
    %v621 = vand.u32 %v594, 2147483648
    %v622 = vor.u32 1.1754944e-38, %v621
    %v623 = vsel %vm620, %v622, %v618
    %v624 = vmul.f32 1.0, %v623
    %v625 = vtanh.pop %v585
    %v626 = vtanh.pop %v586
    %v627 = vmul.f32 %v609, %v559
    %v628 = vmul.f32 %v624, %v560
    %631 = vrot.lane.b32.xlu0 %v625, 64
    %v632 = vpop.permute.xlu0 %631
    %633 = vrot.lane.b32.xlu0 %v626, 64
    %v634 = vpop.permute.xlu0 %633
    %v637 = vmul.f32 %v609, %v632
    %v638 = vmul.f32 %v624, %v634
    %641 = vrot.lane.b32.xlu0 %v637, 32
    %v642 = vpop.permute.xlu0 %641
    %643 = vrot.lane.b32.xlu0 %v638, 32
    %v644 = vpop.permute.xlu0 %643
    %v647 = vadd.f32 %v627, %v642
    %v648 = vadd.f32 %v628, %v644
    %v649 = vtanh.pop %v647
    %v650 = vtanh.pop %v648
    %653 = vrot.lane.b32.xlu0 %v649, 64
    %v654 = vpop.permute.xlu0 %653
    %655 = vrot.lane.b32.xlu0 %v650, 64
    %v656 = vpop.permute.xlu0 %655
    %v659 = vmul.f32 %v609, %v654
    %v660 = vmul.f32 %v624, %v656
    %s661 = sadd.s32 %s314, 2
    %p662 = scmp.lt.s32.totalorder %s661, 8
    %s663 = scalar_select %p662, 1, 0
    %v664 = vstv %s663
    %vm665 = vcmp.eq.s32.totalorder %v664, 1
    %v666 = vsel %vm665, %v659, %v557
    %v667 = vsel %vm665, %v660, %v558
    %v668 = vsel %vm665, %v647, %v559
    %v669 = vsel %vm665, %v648, %v560
    %s670 = scalar_lea.vmem [#allocation2], 48
    %v671 = vld [vmem:[%s670] sm:$0xff]
    %v672 = vld [vmem:[%s670 + $0x8] sm:$0xff]
    %v673 = vpack.c.bf16 %v667, %v666
    %675 = vrot.lane.b32.xlu0 %v673, 32
    %v676 = vpop.permute.xlu0 %675
    %v678 = vsel %vm334, %v676, 0
    %680 = vmatpush.bf16.msra.mxu0 0
    %681 = vmatpush.bf16.msra.mxu0 0
    %682 = vmatpush.bf16.msra.mxu0 0
    %683 = vmatpush.bf16.msra.mxu0 0
    %684 = vmatpush.bf16.msra.mxu0 0
    %685 = vmatpush.bf16.msra.mxu0 0
    %686 = vmatpush.bf16.msra.mxu0 %v331
    %687 = vmatpush.bf16.msra.mxu0 %v330
    %688 = vmatmul.bf16.gmra.mxu0 %v678
    %v689 = vpop.f32.mrf.mxu0
    %v690 = vadd.f32 0.0, %v689
    %v691 = vpop.f32.mrf.mxu0
    %v692 = vadd.f32 0.0, %v691
    %693 = vdwg.mxu0
    %v694 = vadd.f32 %v671, %v690
    %v695 = vadd.f32 %v672, %v692
    %v696 = vxor.u32 %v694, 2147483648
    %v697 = vxor.u32 %v695, 2147483648
    %v698 = vmul.f32 %v696, 1.442695
    %v699 = vpow.pop %v698
    %v700 = vmul.f32 %v697, 1.442695
    %v701 = vpow.pop %v700
    %v702 = vadd.f32 %v699, 1.0
    %v703 = vadd.f32 %v701, 1.0
    %v704 = vrcp.pop %v702
    %v705 = vmul.f32 %v702, %v704
    %v706 = vsub.f32 1.0, %v705
    %v707 = vmul.f32 %v704, %v706
    %v708 = vadd.f32 %v704, %v707
    %vm709 = vweird.f32 %v702
    %vm710 = vweird.f32 %v704
    %vm711 = vmor %vm709, %vm710
    %v712 = vsel %vm711, %v704, %v708
    %v713 = vand.u32 2147483647, %v702
    %vm714 = vcmp.eq.f32.partialorder %v713, 8.507059e+37
    %v715 = vand.u32 %v702, 2147483648
    %v716 = vor.u32 1.1754944e-38, %v715
    %v717 = vsel %vm714, %v716, %v712
    %v718 = vmul.f32 1.0, %v717
    %v719 = vrcp.pop %v703
    %v720 = vmul.f32 %v703, %v719
    %v721 = vsub.f32 1.0, %v720
    %v722 = vmul.f32 %v719, %v721
    %v723 = vadd.f32 %v719, %v722
    %vm724 = vweird.f32 %v703
    %vm725 = vweird.f32 %v719
    %vm726 = vmor %vm724, %vm725
    %v727 = vsel %vm726, %v719, %v723
    %v728 = vand.u32 2147483647, %v703
    %vm729 = vcmp.eq.f32.partialorder %v728, 8.507059e+37
    %v730 = vand.u32 %v703, 2147483648
    %v731 = vor.u32 1.1754944e-38, %v730
    %v732 = vsel %vm729, %v731, %v727
    %v733 = vmul.f32 1.0, %v732
    %v734 = vtanh.pop %v694
    %v735 = vtanh.pop %v695
    %v736 = vmul.f32 %v718, %v668
    %v737 = vmul.f32 %v733, %v669
    %740 = vrot.lane.b32.xlu0 %v734, 64
    %v741 = vpop.permute.xlu0 %740
    %742 = vrot.lane.b32.xlu0 %v735, 64
    %v743 = vpop.permute.xlu0 %742
    %v746 = vmul.f32 %v718, %v741
    %v747 = vmul.f32 %v733, %v743
    %750 = vrot.lane.b32.xlu0 %v746, 32
    %v751 = vpop.permute.xlu0 %750
    %752 = vrot.lane.b32.xlu0 %v747, 32
    %v753 = vpop.permute.xlu0 %752
    %v756 = vadd.f32 %v736, %v751
    %v757 = vadd.f32 %v737, %v753
    %v758 = vtanh.pop %v756
    %v759 = vtanh.pop %v757
    %762 = vrot.lane.b32.xlu0 %v758, 64
    %v763 = vpop.permute.xlu0 %762
    %764 = vrot.lane.b32.xlu0 %v759, 64
    %v765 = vpop.permute.xlu0 %764
    %v768 = vmul.f32 %v718, %v763
    %v769 = vmul.f32 %v733, %v765
    %s770 = sadd.s32 %s314, 3
    %p771 = scmp.lt.s32.totalorder %s770, 8
    %s772 = scalar_select %p771, 1, 0
    %v773 = vstv %s772
    %vm774 = vcmp.eq.s32.totalorder %v773, 1
    %v775 = vsel %vm774, %v768, %v666
    %v776 = vsel %vm774, %v769, %v667
    %v777 = vsel %vm774, %v756, %v668
    %v778 = vsel %vm774, %v757, %v669
    %s779 = scalar_lea.vmem [#allocation2], 64
    %v780 = vld [vmem:[%s779] sm:$0xff]
    %v781 = vld [vmem:[%s779 + $0x8] sm:$0xff]
    %v782 = vpack.c.bf16 %v776, %v775
    %784 = vrot.lane.b32.xlu0 %v782, 32
    %v785 = vpop.permute.xlu0 %784
    %v787 = vsel %vm334, %v785, 0
    %789 = vmatpush.bf16.msra.mxu0 0
    %790 = vmatpush.bf16.msra.mxu0 0
    %791 = vmatpush.bf16.msra.mxu0 0
    %792 = vmatpush.bf16.msra.mxu0 0
    %793 = vmatpush.bf16.msra.mxu0 0
    %794 = vmatpush.bf16.msra.mxu0 0
    %795 = vmatpush.bf16.msra.mxu0 %v331
    %796 = vmatpush.bf16.msra.mxu0 %v330
    %797 = vmatmul.bf16.gmra.mxu0 %v787
    %v798 = vpop.f32.mrf.mxu0
    %v799 = vadd.f32 0.0, %v798
    %v800 = vpop.f32.mrf.mxu0
    %v801 = vadd.f32 0.0, %v800
    %802 = vdwg.mxu0
    %v803 = vadd.f32 %v780, %v799
    %v804 = vadd.f32 %v781, %v801
    %v805 = vxor.u32 %v803, 2147483648
    %v806 = vxor.u32 %v804, 2147483648
    %v807 = vmul.f32 %v805, 1.442695
    %v808 = vpow.pop %v807
    %v809 = vmul.f32 %v806, 1.442695
    %v810 = vpow.pop %v809
    %v811 = vadd.f32 %v808, 1.0
    %v812 = vadd.f32 %v810, 1.0
    %v813 = vrcp.pop %v811
    %v814 = vmul.f32 %v811, %v813
    %v815 = vsub.f32 1.0, %v814
    %v816 = vmul.f32 %v813, %v815
    %v817 = vadd.f32 %v813, %v816
    %vm818 = vweird.f32 %v811
    %vm819 = vweird.f32 %v813
    %vm820 = vmor %vm818, %vm819
    %v821 = vsel %vm820, %v813, %v817
    %v822 = vand.u32 2147483647, %v811
    %vm823 = vcmp.eq.f32.partialorder %v822, 8.507059e+37
    %v824 = vand.u32 %v811, 2147483648
    %v825 = vor.u32 1.1754944e-38, %v824
    %v826 = vsel %vm823, %v825, %v821
    %v827 = vmul.f32 1.0, %v826
    %v828 = vrcp.pop %v812
    %v829 = vmul.f32 %v812, %v828
    %v830 = vsub.f32 1.0, %v829
    %v831 = vmul.f32 %v828, %v830
    %v832 = vadd.f32 %v828, %v831
    %vm833 = vweird.f32 %v812
    %vm834 = vweird.f32 %v828
    %vm835 = vmor %vm833, %vm834
    %v836 = vsel %vm835, %v828, %v832
    %v837 = vand.u32 2147483647, %v812
    %vm838 = vcmp.eq.f32.partialorder %v837, 8.507059e+37
    %v839 = vand.u32 %v812, 2147483648
    %v840 = vor.u32 1.1754944e-38, %v839
    %v841 = vsel %vm838, %v840, %v836
    %v842 = vmul.f32 1.0, %v841
    %v843 = vtanh.pop %v803
    %v844 = vtanh.pop %v804
    %v845 = vmul.f32 %v827, %v777
    %v846 = vmul.f32 %v842, %v778
    %849 = vrot.lane.b32.xlu0 %v843, 64
    %v850 = vpop.permute.xlu0 %849
    %851 = vrot.lane.b32.xlu0 %v844, 64
    %v852 = vpop.permute.xlu0 %851
    %v855 = vmul.f32 %v827, %v850
    %v856 = vmul.f32 %v842, %v852
    %859 = vrot.lane.b32.xlu0 %v855, 32
    %v860 = vpop.permute.xlu0 %859
    %861 = vrot.lane.b32.xlu0 %v856, 32
    %v862 = vpop.permute.xlu0 %861
    %v865 = vadd.f32 %v845, %v860
    %v866 = vadd.f32 %v846, %v862
    %v867 = vtanh.pop %v865
    %v868 = vtanh.pop %v866
    %871 = vrot.lane.b32.xlu0 %v867, 64
    %v872 = vpop.permute.xlu0 %871
    %873 = vrot.lane.b32.xlu0 %v868, 64
    %v874 = vpop.permute.xlu0 %873
    %v877 = vmul.f32 %v827, %v872
    %v878 = vmul.f32 %v842, %v874
    %s879 = sadd.s32 %s314, 4
    %p880 = scmp.lt.s32.totalorder %s879, 8
    %s881 = scalar_select %p880, 1, 0
    %v882 = vstv %s881
    %vm883 = vcmp.eq.s32.totalorder %v882, 1
    %v884 = vsel %vm883, %v877, %v775
    %v885 = vsel %vm883, %v878, %v776
    %v886 = vsel %vm883, %v865, %v777
    %v887 = vsel %vm883, %v866, %v778
    %s888 = scalar_lea.vmem [#allocation2], 80
    %v889 = vld [vmem:[%s888] sm:$0xff]
    %v890 = vld [vmem:[%s888 + $0x8] sm:$0xff]
    %v891 = vpack.c.bf16 %v885, %v884
    %893 = vrot.lane.b32.xlu0 %v891, 32
    %v894 = vpop.permute.xlu0 %893
    %v896 = vsel %vm334, %v894, 0
    %898 = vmatpush.bf16.msra.mxu0 0
    %899 = vmatpush.bf16.msra.mxu0 0
    %900 = vmatpush.bf16.msra.mxu0 0
    %901 = vmatpush.bf16.msra.mxu0 0
    %902 = vmatpush.bf16.msra.mxu0 0
    %903 = vmatpush.bf16.msra.mxu0 0
    %904 = vmatpush.bf16.msra.mxu0 %v331
    %905 = vmatpush.bf16.msra.mxu0 %v330
    %906 = vmatmul.bf16.gmra.mxu0 %v896
    %v907 = vpop.f32.mrf.mxu0
    %v908 = vadd.f32 0.0, %v907
    %v909 = vpop.f32.mrf.mxu0
    %v910 = vadd.f32 0.0, %v909
    %911 = vdwg.mxu0
    %v912 = vadd.f32 %v889, %v908
    %v913 = vadd.f32 %v890, %v910
    %v914 = vxor.u32 %v912, 2147483648
    %v915 = vxor.u32 %v913, 2147483648
    %v916 = vmul.f32 %v914, 1.442695
    %v917 = vpow.pop %v916
    %v918 = vmul.f32 %v915, 1.442695
    %v919 = vpow.pop %v918
    %v920 = vadd.f32 %v917, 1.0
    %v921 = vadd.f32 %v919, 1.0
    %v922 = vrcp.pop %v920
    %v923 = vmul.f32 %v920, %v922
    %v924 = vsub.f32 1.0, %v923
    %v925 = vmul.f32 %v922, %v924
    %v926 = vadd.f32 %v922, %v925
    %vm927 = vweird.f32 %v920
    %vm928 = vweird.f32 %v922
    %vm929 = vmor %vm927, %vm928
    %v930 = vsel %vm929, %v922, %v926
    %v931 = vand.u32 2147483647, %v920
    %vm932 = vcmp.eq.f32.partialorder %v931, 8.507059e+37
    %v933 = vand.u32 %v920, 2147483648
    %v934 = vor.u32 1.1754944e-38, %v933
    %v935 = vsel %vm932, %v934, %v930
    %v936 = vmul.f32 1.0, %v935
    %v937 = vrcp.pop %v921
    %v938 = vmul.f32 %v921, %v937
    %v939 = vsub.f32 1.0, %v938
    %v940 = vmul.f32 %v937, %v939
    %v941 = vadd.f32 %v937, %v940
    %vm942 = vweird.f32 %v921
    %vm943 = vweird.f32 %v937
    %vm944 = vmor %vm942, %vm943
    %v945 = vsel %vm944, %v937, %v941
    %v946 = vand.u32 2147483647, %v921
    %vm947 = vcmp.eq.f32.partialorder %v946, 8.507059e+37
    %v948 = vand.u32 %v921, 2147483648
    %v949 = vor.u32 1.1754944e-38, %v948
    %v950 = vsel %vm947, %v949, %v945
    %v951 = vmul.f32 1.0, %v950
    %v952 = vtanh.pop %v912
    %v953 = vtanh.pop %v913
    %v954 = vmul.f32 %v936, %v886
    %v955 = vmul.f32 %v951, %v887
    %958 = vrot.lane.b32.xlu0 %v952, 64
    %v959 = vpop.permute.xlu0 %958
    %960 = vrot.lane.b32.xlu0 %v953, 64
    %v961 = vpop.permute.xlu0 %960
    %v964 = vmul.f32 %v936, %v959
    %v965 = vmul.f32 %v951, %v961
    %968 = vrot.lane.b32.xlu0 %v964, 32
    %v969 = vpop.permute.xlu0 %968
    %970 = vrot.lane.b32.xlu0 %v965, 32
    %v971 = vpop.permute.xlu0 %970
    %v974 = vadd.f32 %v954, %v969
    %v975 = vadd.f32 %v955, %v971
    %v976 = vtanh.pop %v974
    %v977 = vtanh.pop %v975
    %980 = vrot.lane.b32.xlu0 %v976, 64
    %v981 = vpop.permute.xlu0 %980
    %982 = vrot.lane.b32.xlu0 %v977, 64
    %v983 = vpop.permute.xlu0 %982
    %v986 = vmul.f32 %v936, %v981
    %v987 = vmul.f32 %v951, %v983
    %s988 = sadd.s32 %s314, 5
    %p989 = scmp.lt.s32.totalorder %s988, 8
    %s990 = scalar_select %p989, 1, 0
    %v991 = vstv %s990
    %vm992 = vcmp.eq.s32.totalorder %v991, 1
    %v993 = vsel %vm992, %v986, %v884
    %v994 = vsel %vm992, %v987, %v885
    %v995 = vsel %vm992, %v974, %v886
    %v996 = vsel %vm992, %v975, %v887
    %s997 = scalar_lea.vmem [#allocation2], 96
    %v998 = vld [vmem:[%s997] sm:$0xff]
    %v999 = vld [vmem:[%s997 + $0x8] sm:$0xff]
    %v1000 = vpack.c.bf16 %v994, %v993
    %1002 = vrot.lane.b32.xlu0 %v1000, 32
    %v1003 = vpop.permute.xlu0 %1002
    %v1005 = vsel %vm334, %v1003, 0
    %1007 = vmatpush.bf16.msra.mxu0 0
    %1008 = vmatpush.bf16.msra.mxu0 0
    %1009 = vmatpush.bf16.msra.mxu0 0
    %1010 = vmatpush.bf16.msra.mxu0 0
    %1011 = vmatpush.bf16.msra.mxu0 0
    %1012 = vmatpush.bf16.msra.mxu0 0
    %1013 = vmatpush.bf16.msra.mxu0 %v331
    %1014 = vmatpush.bf16.msra.mxu0 %v330
    %1015 = vmatmul.bf16.gmra.mxu0 %v1005
    %v1016 = vpop.f32.mrf.mxu0
    %v1017 = vadd.f32 0.0, %v1016
    %v1018 = vpop.f32.mrf.mxu0
    %v1019 = vadd.f32 0.0, %v1018
    %1020 = vdwg.mxu0
    %v1021 = vadd.f32 %v998, %v1017
    %v1022 = vadd.f32 %v999, %v1019
    %v1023 = vxor.u32 %v1021, 2147483648
    %v1024 = vxor.u32 %v1022, 2147483648
    %v1025 = vmul.f32 %v1023, 1.442695
    %v1026 = vpow.pop %v1025
    %v1027 = vmul.f32 %v1024, 1.442695
    %v1028 = vpow.pop %v1027
    %v1029 = vadd.f32 %v1026, 1.0
    %v1030 = vadd.f32 %v1028, 1.0
    %v1031 = vrcp.pop %v1029
    %v1032 = vmul.f32 %v1029, %v1031
    %v1033 = vsub.f32 1.0, %v1032
    %v1034 = vmul.f32 %v1031, %v1033
    %v1035 = vadd.f32 %v1031, %v1034
    %vm1036 = vweird.f32 %v1029
    %vm1037 = vweird.f32 %v1031
    %vm1038 = vmor %vm1036, %vm1037
    %v1039 = vsel %vm1038, %v1031, %v1035
    %v1040 = vand.u32 2147483647, %v1029
    %vm1041 = vcmp.eq.f32.partialorder %v1040, 8.507059e+37
    %v1042 = vand.u32 %v1029, 2147483648
    %v1043 = vor.u32 1.1754944e-38, %v1042
    %v1044 = vsel %vm1041, %v1043, %v1039
    %v1045 = vmul.f32 1.0, %v1044
    %v1046 = vrcp.pop %v1030
    %v1047 = vmul.f32 %v1030, %v1046
    %v1048 = vsub.f32 1.0, %v1047
    %v1049 = vmul.f32 %v1046, %v1048
    %v1050 = vadd.f32 %v1046, %v1049
    %vm1051 = vweird.f32 %v1030
    %vm1052 = vweird.f32 %v1046
    %vm1053 = vmor %vm1051, %vm1052
    %v1054 = vsel %vm1053, %v1046, %v1050
    %v1055 = vand.u32 2147483647, %v1030
    %vm1056 = vcmp.eq.f32.partialorder %v1055, 8.507059e+37
    %v1057 = vand.u32 %v1030, 2147483648
    %v1058 = vor.u32 1.1754944e-38, %v1057
    %v1059 = vsel %vm1056, %v1058, %v1054
    %v1060 = vmul.f32 1.0, %v1059
    %v1061 = vtanh.pop %v1021
    %v1062 = vtanh.pop %v1022
    %v1063 = vmul.f32 %v1045, %v995
    %v1064 = vmul.f32 %v1060, %v996
    %1067 = vrot.lane.b32.xlu0 %v1061, 64
    %v1068 = vpop.permute.xlu0 %1067
    %1069 = vrot.lane.b32.xlu0 %v1062, 64
    %v1070 = vpop.permute.xlu0 %1069
    %v1073 = vmul.f32 %v1045, %v1068
    %v1074 = vmul.f32 %v1060, %v1070
    %1077 = vrot.lane.b32.xlu0 %v1073, 32
    %v1078 = vpop.permute.xlu0 %1077
    %1079 = vrot.lane.b32.xlu0 %v1074, 32
    %v1080 = vpop.permute.xlu0 %1079
    %v1083 = vadd.f32 %v1063, %v1078
    %v1084 = vadd.f32 %v1064, %v1080
    %v1085 = vtanh.pop %v1083
    %v1086 = vtanh.pop %v1084
    %1089 = vrot.lane.b32.xlu0 %v1085, 64
    %v1090 = vpop.permute.xlu0 %1089
    %1091 = vrot.lane.b32.xlu0 %v1086, 64
    %v1092 = vpop.permute.xlu0 %1091
    %v1095 = vmul.f32 %v1045, %v1090
    %v1096 = vmul.f32 %v1060, %v1092
    %s1097 = sadd.s32 %s314, 6
    %p1098 = scmp.lt.s32.totalorder %s1097, 8
    %s1099 = scalar_select %p1098, 1, 0
    %v1100 = vstv %s1099
    %vm1101 = vcmp.eq.s32.totalorder %v1100, 1
    %v1102 = vsel %vm1101, %v1095, %v993
    %v1103 = vsel %vm1101, %v1096, %v994
    %v1104 = vsel %vm1101, %v1083, %v995
    %v1105 = vsel %vm1101, %v1084, %v996
    %s1106 = scalar_lea.vmem [#allocation2], 112
    %v1107 = vld [vmem:[%s1106] sm:$0xff]
    %v1108 = vld [vmem:[%s1106 + $0x8] sm:$0xff]
    %v1109 = vpack.c.bf16 %v1103, %v1102
    %1111 = vrot.lane.b32.xlu0 %v1109, 32
    %v1112 = vpop.permute.xlu0 %1111
    %v1114 = vsel %vm334, %v1112, 0
    %1116 = vmatpush.bf16.msra.mxu0 0
    %1117 = vmatpush.bf16.msra.mxu0 0
    %1118 = vmatpush.bf16.msra.mxu0 0
    %1119 = vmatpush.bf16.msra.mxu0 0
    %1120 = vmatpush.bf16.msra.mxu0 0
    %1121 = vmatpush.bf16.msra.mxu0 0
    %1122 = vmatpush.bf16.msra.mxu0 %v331
    %1123 = vmatpush.bf16.msra.mxu0 %v330
    %1124 = vmatmul.bf16.gmra.mxu0 %v1114
    %v1125 = vpop.f32.mrf.mxu0
    %v1126 = vadd.f32 0.0, %v1125
    %v1127 = vpop.f32.mrf.mxu0
    %v1128 = vadd.f32 0.0, %v1127
    %1129 = vdwg.mxu0
    %v1130 = vadd.f32 %v1107, %v1126
    %v1131 = vadd.f32 %v1108, %v1128
    %v1132 = vxor.u32 %v1130, 2147483648
    %v1133 = vxor.u32 %v1131, 2147483648
    %v1134 = vmul.f32 %v1132, 1.442695
    %v1135 = vpow.pop %v1134
    %v1136 = vmul.f32 %v1133, 1.442695
    %v1137 = vpow.pop %v1136
    %v1138 = vadd.f32 %v1135, 1.0
    %v1139 = vadd.f32 %v1137, 1.0
    %v1140 = vrcp.pop %v1138
    %v1141 = vmul.f32 %v1138, %v1140
    %v1142 = vsub.f32 1.0, %v1141
    %v1143 = vmul.f32 %v1140, %v1142
    %v1144 = vadd.f32 %v1140, %v1143
    %vm1145 = vweird.f32 %v1138
    %vm1146 = vweird.f32 %v1140
    %vm1147 = vmor %vm1145, %vm1146
    %v1148 = vsel %vm1147, %v1140, %v1144
    %v1149 = vand.u32 2147483647, %v1138
    %vm1150 = vcmp.eq.f32.partialorder %v1149, 8.507059e+37
    %v1151 = vand.u32 %v1138, 2147483648
    %v1152 = vor.u32 1.1754944e-38, %v1151
    %v1153 = vsel %vm1150, %v1152, %v1148
    %v1154 = vmul.f32 1.0, %v1153
    %v1155 = vrcp.pop %v1139
    %v1156 = vmul.f32 %v1139, %v1155
    %v1157 = vsub.f32 1.0, %v1156
    %v1158 = vmul.f32 %v1155, %v1157
    %v1159 = vadd.f32 %v1155, %v1158
    %vm1160 = vweird.f32 %v1139
    %vm1161 = vweird.f32 %v1155
    %vm1162 = vmor %vm1160, %vm1161
    %v1163 = vsel %vm1162, %v1155, %v1159
    %v1164 = vand.u32 2147483647, %v1139
    %vm1165 = vcmp.eq.f32.partialorder %v1164, 8.507059e+37
    %v1166 = vand.u32 %v1139, 2147483648
    %v1167 = vor.u32 1.1754944e-38, %v1166
    %v1168 = vsel %vm1165, %v1167, %v1163
    %v1169 = vmul.f32 1.0, %v1168
    %v1170 = vtanh.pop %v1130
    %v1171 = vtanh.pop %v1131
    %v1172 = vmul.f32 %v1154, %v1104
    %v1173 = vmul.f32 %v1169, %v1105
    %1176 = vrot.lane.b32.xlu0 %v1170, 64
    %v1177 = vpop.permute.xlu0 %1176
    %1178 = vrot.lane.b32.xlu0 %v1171, 64
    %v1179 = vpop.permute.xlu0 %1178
    %v1182 = vmul.f32 %v1154, %v1177
    %v1183 = vmul.f32 %v1169, %v1179
    %1186 = vrot.lane.b32.xlu0 %v1182, 32
    %v1187 = vpop.permute.xlu0 %1186
    %1188 = vrot.lane.b32.xlu0 %v1183, 32
    %v1189 = vpop.permute.xlu0 %1188
    %v1192 = vadd.f32 %v1172, %v1187
    %v1193 = vadd.f32 %v1173, %v1189
    %v1194 = vtanh.pop %v1192
    %v1195 = vtanh.pop %v1193
    %1198 = vrot.lane.b32.xlu0 %v1194, 64
    %v1199 = vpop.permute.xlu0 %1198
    %1200 = vrot.lane.b32.xlu0 %v1195, 64
    %v1201 = vpop.permute.xlu0 %1200
    %v1204 = vmul.f32 %v1154, %v1199
    %v1205 = vmul.f32 %v1169, %v1201
    %s1206 = sadd.s32 %s314, 7
    %p1207 = scmp.lt.s32.totalorder %s1206, 8
    %s1208 = scalar_select %p1207, 1, 0
    %v1209 = vstv %s1208
    %vm1210 = vcmp.eq.s32.totalorder %v1209, 1
    %v1211 = vsel %vm1210, %v1204, %v1102
    %v1212 = vsel %vm1210, %v1205, %v1103
    %v1213 = vsel %vm1210, %v1192, %v1104
    %v1214 = vsel %vm1210, %v1193, %v1105
    %1217 = vrot.lane.b32.xlu0 %v1211, 32
    %v1218 = vpop.permute.xlu0 %1217
    %1219 = vrot.lane.b32.xlu0 %v1212, 32
    %v1220 = vpop.permute.xlu0 %1219
    %1223 = vst.msk [vmem:[#allocation3] sm:$0xff] %vm334, %v1218
    %1224 = vst.msk [vmem:[#allocation3 + $0x8] sm:$0xff] %vm334, %v1220
    %1227 = vrot.lane.b32.xlu0 %v1213, 96
    %v1228 = vpop.permute.xlu0 %1227
    %1229 = vrot.lane.b32.xlu0 %v1214, 96
    %v1230 = vpop.permute.xlu0 %1229
    %1233 = vst.msk [vmem:[#allocation4] sm:$0xff] %vm334, %v1228
    %1234 = vst.msk [vmem:[#allocation4 + $0x8] sm:$0xff] %vm334, %v1230
    // Predicated region
    $region46: #{tpu_custom_call.1} parent=1 // pred_check
      %p1235 = pneg %p88
    $region47: #{tpu_custom_call.1} parent=1 // pred_check_branch
      %1237 = sbr.rel (%p1235) target = $region49
    $region48: #{tpu_custom_call.1} parent=1 // pred_region
      %v1238 = vpack.c.bf16 %v1212, %v1211
      %v1239 = vld [vmem:[#allocation11] sm:$0xf]
      %v1240 = vld [vmem:[#allocation11 + $0x4] sm:$0xf]
      %v1241 = vld [vmem:[#allocation11 + $0x8] sm:$0xf]
      %v1242 = vld [vmem:[#allocation11 + $0xc] sm:$0xf]
      %v1243 = vld [vmem:[%s5] sm:$0x1]
      %v1245 = vperm.slane %v1243, 0
      %1248 = vrot.lane.b32.xlu0 %v1238, 32
      %v1249 = vpop.permute.xlu0 %1248
      %v1254 = vunpack.c.l.b16 %v1239
      %v1255 = vunpack.c.l.b16 %v1240
      %v1256 = vunpack.c.l.b16 %v1241
      %v1257 = vunpack.c.l.b16 %v1242
      %v1258 = vpack.c.b16 %v1255, %v1254
      %v1259 = vpack.c.b16 %v1257, %v1256
      %v1263 = vsel %vm334, %v1249, 0
      %1265 = vmatpush.bf16.msra.mxu0 0
      %1266 = vmatpush.bf16.msra.mxu0 0
      %1267 = vmatpush.bf16.msra.mxu0 0
      %1268 = vmatpush.bf16.msra.mxu0 0
      %1269 = vmatpush.bf16.msra.mxu0 0
      %1270 = vmatpush.bf16.msra.mxu0 0
      %1271 = vmatpush.bf16.msra.mxu0 %v1259
      %1272 = vmatpush.bf16.msra.mxu0 %v1258
      %1273 = vmatmul.bf16.gmra.mxu0 %v1263
      %v1274 = vpop.f32.mrf.mxu0
      %v1275 = vadd.f32 %v1245, %v1274
      %v1276 = vpop.f32.mrf.mxu0
      %v1277 = vadd.f32 %v1245, %v1276
      %1278 = vdwg.mxu0
      %1279 = vst [vmem:[#allocation13] sm:$0xff] %v1275
      %1280 = vst [vmem:[#allocation13 + $0x8] sm:$0xff] %v1277
    $region49: #{tpu_custom_call.1} parent=1 // pred_fallthru
      _
    // Predicated region
    $region50: #{tpu_custom_call.1} parent=1 // pred_check
      _
    $region51: #{tpu_custom_call.1} parent=1 // pred_check_branch
      %1282 = sbr.rel (0) target = $region53
    $region52: #{tpu_custom_call.1} parent=1 // pred_region
      %1284 = vsyncadd [#allocation7], 0
      %s1285 = sshll.u32 [#allocation13], 4
      %s1286 = int_to_ptr.vmem [resolvable:$true] %s1285
      %s1287 = sshll.u32 %s6, 4
      %s1288 = int_to_ptr.hbm [resolvable:$true] %s1287
      %1293 = dma.vmem_to_hbm [thread:$0]  %s1286, 256, %s1288, [#allocation7], 128, 128, 8
    $region53: #{tpu_custom_call.1} parent=1 // pred_fallthru
      _
    // Predicated region
    $region54: #{tpu_custom_call.1} parent=1 // pred_check
      _
    $region55: #{tpu_custom_call.1} parent=1 // pred_check_branch
      %1295 = sbr.rel (0) target = $region57
    $region56: #{tpu_custom_call.1} parent=1 // pred_region
      %1297 = dma.done [#allocation7], 256
    $region57: #{tpu_custom_call.1} parent=1 // pred_fallthru
      _
    %1298 = vsyncpa [#allocation6], 1
    %1299 = vsyncpa [#allocation9], 1
    %1300 = vsyncpa [#allocation12], 1
    %1301 = vsyncpa [#allocation7], 1

</llo_original>
